<compile_context>
chip_gen: v5e
topology: v5e:2x2
jax: 0.10.0
libtpu: 0.0.40
codegen_flags: <defaults>
</compile_context>

<pallas_src>
import functools

import jax
import jax.numpy as jnp
from jax.experimental import pallas as pl
from jax.experimental.pallas import tpu as pltpu


def _round_up(x, m):
    return ((x + m - 1) // m) * m


# -----------------------------------------------------------------------------
# Fused kernel: synthetic DINOStego (backbone + head) + UnSegEvaluator probes
# -----------------------------------------------------------------------------
def stego_fused_kernel(nvalid_ref,                       # scalar prefetch (SMEM)
                       img_ref, label_ref, wbT_ref, bbT_ref, whT_ref, bhT_ref,
                       wlT_ref, blT_ref, nclu_ref,       # inputs (VMEM)
                       code_ref, lin_ref, clu_ref, part_ref):   # outputs
    i = pl.program_id(0)
    tile = label_ref.shape[-1]          # lane (pixel) tile width
    n_valid = nvalid_ref[0]

    # ---- synthetic DINOStego backbone + segmentation head (two matmuls) ----
    # TODO(synk): the real STEGO self/knn/random feature-correspondence loss is
    # not reproduced here; eval-mode semantics use model_loss = 0 anyway.
    x = img_ref[...].astype(jnp.bfloat16)                              # (Cin, T)
    feat = jnp.dot(wbT_ref[...], x,
                   preferred_element_type=jnp.float32) + bbT_ref[...]  # (D, T)
    feat = jnp.maximum(feat, 0.0)                                      # f32 VPU
    code = jnp.dot(whT_ref[...], feat.astype(jnp.bfloat16),
                   preferred_element_type=jnp.float32) + bhT_ref[...]  # (D, T)
    code_ref[...] = code                                               # lane-dense store

    # Validity of each pixel column (columns past n_valid are lane padding).
    col = jax.lax.broadcasted_iota(jnp.int32, (1, tile), 1) + i * tile
    pix_valid = col < n_valid                                          # (1, T) bool
    pix_valid_f = pix_valid.astype(jnp.float32)

    # ---- linear probe: 1x1 conv == matmul + masked cross-entropy ----
    code16 = code.astype(jnp.bfloat16)
    logits = jnp.dot(wlT_ref[...], code16,
                     preferred_element_type=jnp.float32) + blT_ref[...]  # (K, T)
    k = logits.shape[0]
    cls_idx = jax.lax.broadcasted_iota(jnp.int32, logits.shape, 0)
    m = jnp.max(logits, axis=0, keepdims=True)                           # (1, T)
    # first-occurrence argmax along sublanes via max + masked min-index
    lin_ref[...] = jnp.min(jnp.where(logits == m, cls_idx, k),
                           axis=0, keepdims=True).astype(jnp.int32)

    label = label_ref[...]                                               # (1, T) i32
    lse = m + jnp.log(jnp.sum(jnp.exp(logits - m), axis=0, keepdims=True))
    picked = jnp.sum(jnp.where(cls_idx == label, logits, 0.0),
                     axis=0, keepdims=True)                              # (1, T)
    ce = lse - picked
    lab_valid = (jnp.logical_and(label >= 0, label < k)
                 & pix_valid).astype(jnp.float32)
    ce_sum = jnp.sum(ce * lab_valid)
    cnt_sum = jnp.sum(lab_valid)

    # ---- cluster probe: cosine similarity vs pre-normalized centroids ----
    nf = code * jax.lax.rsqrt(jnp.sum(code * code, axis=0, keepdims=True) + 1e-12)
    inner = jnp.dot(nclu_ref[...], nf.astype(jnp.bfloat16),
                    preferred_element_type=jnp.float32)                  # (M, T)
    mm = inner.shape[0]
    c_idx = jax.lax.broadcasted_iota(jnp.int32, inner.shape, 0)
    mx = jnp.max(inner, axis=0, keepdims=True)                           # (1, T)
    clu_ref[...] = jnp.min(jnp.where(inner == mx, c_idx, mm),
                           axis=0, keepdims=True).astype(jnp.int32)
    cos_sum = jnp.sum(mx * pix_valid_f)

    # ---- per-tile partial sums: tiny lane-dense slab, no carried state ----
    # lane 0: sum(ce * valid), lane 1: count(valid), lane 2: sum(max cos sim)
    lane = jax.lax.broadcasted_iota(jnp.int32, (1, 1, 128), 2)
    part_ref[...] = jnp.where(lane == 0, ce_sum,
                      jnp.where(lane == 1, cnt_sum,
                        jnp.where(lane == 2, cos_sum, 0.0))).astype(jnp.float32)


def run_stego_fused(img_cm, label_cm, wb, bb, wh, bh, wl, bl, clusters,
                    *, max_tile=1024):
    """img_cm: (Cin, N) f32, label_cm: (1, N) i32, N = B*H*W pixels."""
    cin, n = img_cm.shape
    d = wb.shape[1]
    k = wl.shape[1]
    m = clusters.shape[0]

    # Lane tile: big enough to amortize the ~0.35us/step pipeline overhead,
    # but keep grid >= 2 when possible so v7x's two TensorCores both get work
    # (the single grid axis is "parallel"); cap it to keep live vregs modest.
    tile = max(128, min(max_tile, _round_up(pl.cdiv(n, 2), 128)))
    g = pl.cdiv(n, tile)
    n_pad = g * tile
    pad = n_pad - n
    if pad:
        img_cm = jnp.pad(img_cm, ((0, 0), (0, pad)))
        label_cm = jnp.pad(label_cm, ((0, 0), (0, pad)), constant_values=-1)

    # Hoisted once (outside the per-tile loop): channel-major weight
    # transposes, bf16 casts of the MXU operands, centroid L2 normalization.
    wbT = jnp.transpose(wb).astype(jnp.bfloat16)        # (D, Cin)
    whT = jnp.transpose(wh).astype(jnp.bfloat16)        # (D, D)
    wlT = jnp.transpose(wl).astype(jnp.bfloat16)        # (K, D)
    bbT = bb.reshape(d, 1).astype(jnp.float32)
    bhT = bh.reshape(d, 1).astype(jnp.float32)
    blT = bl.reshape(k, 1).astype(jnp.float32)
    nclusters = (clusters * jax.lax.rsqrt(
        jnp.sum(clusters * clusters, axis=-1, keepdims=True) + 1e-12)
                 ).astype(jnp.bfloat16)                 # (M, D)

    n_valid = jnp.array([n], jnp.int32)                 # scalar prefetch

    code, lin_preds, clu_preds, partials = pl.pallas_call(
        stego_fused_kernel,
        out_shape=(jax.ShapeDtypeStruct((d, n_pad), jnp.float32),   # code (D, N)
                   jax.ShapeDtypeStruct((1, n_pad), jnp.int32),     # linear preds
                   jax.ShapeDtypeStruct((1, n_pad), jnp.int32),     # cluster preds
                   jax.ShapeDtypeStruct((g, 1, 128), jnp.float32)), # loss partials
        grid_spec=pltpu.PrefetchScalarGridSpec(
            num_scalar_prefetch=1, grid=(g,),
            in_specs=[pl.BlockSpec((cin, tile), lambda i, nv: (0, i)),
                      pl.BlockSpec((1, tile),   lambda i, nv: (0, i)),
                      pl.BlockSpec((d, cin),    lambda i, nv: (0, 0)),
                      pl.BlockSpec((d, 1),      lambda i, nv: (0, 0)),
                      pl.BlockSpec((d, d),      lambda i, nv: (0, 0)),
                      pl.BlockSpec((d, 1),      lambda i, nv: (0, 0)),
                      pl.BlockSpec((k, d),      lambda i, nv: (0, 0)),
                      pl.BlockSpec((k, 1),      lambda i, nv: (0, 0)),
                      pl.BlockSpec((m, d),      lambda i, nv: (0, 0))],
            out_specs=[pl.BlockSpec((d, tile),   lambda i, nv: (0, i)),
                       pl.BlockSpec((1, tile),   lambda i, nv: (0, i)),
                       pl.BlockSpec((1, tile),   lambda i, nv: (0, i)),
                       pl.BlockSpec((1, 1, 128), lambda i, nv: (i, 0, 0))]),
        compiler_params=pltpu.CompilerParams(
            dimension_semantics=("parallel",)),
    )(n_valid, img_cm, label_cm, wbT, bbT, whT, bhT, wlT, blT, nclusters)

    ce_total = jnp.sum(partials[:, 0, 0])
    cnt_total = jnp.sum(partials[:, 0, 1])
    cos_total = jnp.sum(partials[:, 0, 2])
    linear_loss = ce_total / jnp.maximum(cnt_total, 1.0)
    cluster_loss = -cos_total / jnp.float32(n)

    return (code[:, :n], lin_preds[:, :n], clu_preds[:, :n],
            linear_loss, cluster_loss)


# -----------------------------------------------------------------------------
# StegoWrapper.forward (eval mode: training=False -> model_loss = 0)
# -----------------------------------------------------------------------------
def stego_wrapper_forward(img, aug_img, label, params, *, stego_weight=1.0,
                          training=False, max_tile=1024):
    del aug_img  # unused by the reference forward
    b, c, h, w = img.shape
    n = b * h * w
    # Channel-major feed: NCHW already has channels leading per-sample; only
    # the small batch axis is moved (whole HxW planes stay contiguous), vs the
    # full element-granular NCHW<->NHWC relayout of the row-major version.
    x_cm = jnp.transpose(img, (1, 0, 2, 3)).reshape(c, n).astype(jnp.float32)
    label_cm = label.reshape(1, n).astype(jnp.int32)

    # Fused model + evaluator.  `code` feeding the evaluator part is not
    # differentiated here, matching code.detach() (forward-only semantics).
    code_cm, lin_preds, clu_preds, linear_loss, cluster_loss = run_stego_fused(
        x_cm, label_cm, params["wb"], params["bb"], params["wh"], params["bh"],
        params["wl"], params["bl"], params["clusters"], max_tile=max_tile)

    stego_loss = jnp.float32(0.0)
    output = {"stego-loss": stego_loss}
    if training:
        model_loss = stego_loss * stego_weight
        output["loss"] = model_loss
    else:
        model_loss = jnp.float32(0.0)

    output["linear-loss"] = linear_loss
    output["cluster-loss"] = cluster_loss
    total_loss = model_loss + linear_loss + cluster_loss

    linear_preds = lin_preds.reshape(b, h, w)
    cluster_preds = clu_preds.reshape(b, h, w)
    code_nchw = jnp.transpose(code_cm.reshape(-1, b, h, w), (1, 0, 2, 3))  # NCHW
    return total_loss, output, (linear_preds, cluster_preds), code_nchw


# -----------------------------------------------------------------------------
# Pure-JAX reference (correctness check; mirrors the kernel's bf16 matmul
# operands / f32 accumulation so comparisons are numerically stable).
# -----------------------------------------------------------------------------
def reference_forward(img, label, params):
    b, c, h, w = img.shape
    x = jnp.transpose(img, (0, 2, 3, 1)).reshape(-1, c).astype(jnp.float32)
    wb16 = params["wb"].astype(jnp.bfloat16)
    wh16 = params["wh"].astype(jnp.bfloat16)
    wl16 = params["wl"].astype(jnp.bfloat16)

    feat = jnp.dot(x.astype(jnp.bfloat16), wb16,
                   preferred_element_type=jnp.float32) + params["bb"]
    feat = jnp.maximum(feat, 0.0)
    code = jnp.dot(feat.astype(jnp.bfloat16), wh16,
                   preferred_element_type=jnp.float32) + params["bh"]
    k = params["wl"].shape[1]

    logits = jnp.dot(code.astype(jnp.bfloat16), wl16,
                     preferred_element_type=jnp.float32) + params["bl"]
    lin_preds = jnp.argmax(logits, axis=-1)
    lab = label.reshape(-1).astype(jnp.int32)
    valid = ((lab >= 0) & (lab < k)).astype(jnp.float32)
    lse = jax.scipy.special.logsumexp(logits, axis=-1)
    picked = jnp.take_along_axis(logits, jnp.clip(lab, 0, k - 1)[:, None], 1)[:, 0]
    ce = lse - picked
    linear_loss = jnp.sum(ce * valid) / jnp.maximum(jnp.sum(valid), 1.0)

    nf = code * jax.lax.rsqrt(jnp.sum(code * code, -1, keepdims=True) + 1e-12)
    cl = params["clusters"]
    nc = cl * jax.lax.rsqrt(jnp.sum(cl * cl, -1, keepdims=True) + 1e-12)
    inner = jnp.dot(nf.astype(jnp.bfloat16), nc.astype(jnp.bfloat16).T,
                    preferred_element_type=jnp.float32)
    clu_preds = jnp.argmax(inner, axis=-1)
    cluster_loss = -jnp.mean(jnp.max(inner, axis=-1))

    total = linear_loss + cluster_loss
    code_nchw = jnp.transpose(code.reshape(b, h, w, -1), (0, 3, 1, 2))
    return (total, linear_loss, cluster_loss,
            lin_preds.reshape(b, h, w), clu_preds.reshape(b, h, w), code_nchw)


def _check(img, aug_img, label, params, max_tile):
    fwd = jax.jit(functools.partial(stego_wrapper_forward, training=False,
                                    max_tile=max_tile))
    total_loss, output, (linear_preds, cluster_preds), code = fwd(
        img, aug_img, label, params)
    jax.block_until_ready(total_loss)

    ref_total, ref_lin, ref_clu, ref_lp, ref_cp, ref_code = reference_forward(
        img, label, params)
    assert jnp.allclose(output["linear-loss"], ref_lin, atol=2e-3), "linear loss mismatch"
    assert jnp.allclose(output["cluster-loss"], ref_clu, atol=2e-3), "cluster loss mismatch"
    assert jnp.allclose(total_loss, ref_total, atol=2e-3), "total loss mismatch"
    # Pred comparisons tolerate rare near-tie flips from MXU vs XLA f32
    # accumulation order (both paths use identical bf16-rounded operands).
    assert jnp.mean(linear_preds == ref_lp) >= 0.998, "linear preds mismatch"
    assert jnp.mean(cluster_preds == ref_cp) >= 0.998, "cluster preds mismatch"
    assert code.shape == ref_code.shape
    assert jnp.allclose(code, ref_code, atol=2e-3), "code mismatch"


if __name__ == "__main__":
    # Config (small, consistent with the module's __init__)
    OUTPUT_DIM = 32            # cfg['model']['pretrained']['dim']
    NUM_CLASSES = 8            # cfg['num_classes']
    EXTRA_CLASSES = 2          # cfg['eval']['extra_classes']

    key = jax.random.PRNGKey(0)
    k_img, k_aug, k_lab, k_wb, k_wh, k_wl, k_cl = jax.random.split(key, 7)

    params = {
        "wb": 0.1 * jax.random.normal(k_wb, (3, OUTPUT_DIM), jnp.float32),
        "bb": jnp.zeros((1, OUTPUT_DIM), jnp.float32),
        "wh": 0.1 * jax.random.normal(k_wh, (OUTPUT_DIM, OUTPUT_DIM), jnp.float32),
        "bh": jnp.zeros((1, OUTPUT_DIM), jnp.float32),
        "wl": 0.1 * jax.random.normal(k_wl, (OUTPUT_DIM, NUM_CLASSES), jnp.float32),
        "bl": jnp.zeros((1, NUM_CLASSES), jnp.float32),
        "clusters": jax.random.normal(
            k_cl, (NUM_CLASSES + EXTRA_CLASSES, OUTPUT_DIM), jnp.float32),
    }

    # Check 1: shipped config (N = 2*16*16 = 512 pixels -> tile=256, grid=2,
    # so the "parallel" axis can shard across v7x's two TensorCores).
    B, C, H, W = 2, 3, 16, 16
    img = jax.random.normal(k_img, (B, C, H, W), jnp.float32)
    aug_img = jax.random.normal(k_aug, (B, C, H, W), jnp.float32)
    label = jax.random.randint(k_lab, (B, H, W), -1, NUM_CLASSES, jnp.int32)
    _check(img, aug_img, label, params, max_tile=1024)

    # Check 2: pixel count not a lane-tile multiple (N = 2*20*16 = 640 ->
    # padding + masked tail), exercising the remainder path.
    B2, H2, W2 = 2, 20, 16
    k_img2, k_lab2 = jax.random.split(jax.random.PRNGKey(1), 2)
    img2 = jax.random.normal(k_img2, (B2, C, H2, W2), jnp.float32)
    label2 = jax.random.randint(k_lab2, (B2, H2, W2), -1, NUM_CLASSES, jnp.int32)
    _check(img2, img2, label2, params, max_tile=1024)

    print("KERNEL_OK")
</pallas_src>

<mosaic_0001>
module attributes {stable_mosaic.version = 11 : i64} {
  func.func @stego_fused_kernel(%arg0: i32, %arg1: memref<1xi32, #tpu.memory_space<smem>>, %arg2: memref<3x256xf32, #tpu.memory_space<vmem>>, %arg3: memref<1x256xi32, #tpu.memory_space<vmem>>, %arg4: memref<32x3xbf16, #tpu.memory_space<vmem>>, %arg5: memref<32x1xf32, #tpu.memory_space<vmem>>, %arg6: memref<32x32xbf16, #tpu.memory_space<vmem>>, %arg7: memref<32x1xf32, #tpu.memory_space<vmem>>, %arg8: memref<8x32xbf16, #tpu.memory_space<vmem>>, %arg9: memref<8x1xf32, #tpu.memory_space<vmem>>, %arg10: memref<10x32xbf16, #tpu.memory_space<vmem>>, %arg11: memref<32x256xf32, #tpu.memory_space<vmem>>, %arg12: memref<1x256xi32, #tpu.memory_space<vmem>>, %arg13: memref<1x256xi32, #tpu.memory_space<vmem>>, %arg14: memref<1x1x128xf32, #tpu.memory_space<vmem>>) attributes {dimension_semantics = [#tpu.dimension_semantics<parallel>], iteration_bounds = array<i64: 2>, scalar_prefetch = 1 : i64, scratch_operands = 0 : i64, tpu.core_type = #tpu.core_type<tc>, window_params = [{transform_indices = @transform_0, window_bounds = array<i64: 3, 256>}, {transform_indices = @transform_1, window_bounds = array<i64: 1, 256>}, {pipeline_mode = #tpu.pipeline_mode<synchronous>, transform_indices = @transform_2, window_bounds = array<i64: 32, 3>}, {pipeline_mode = #tpu.pipeline_mode<synchronous>, transform_indices = @transform_3, window_bounds = array<i64: 32, 1>}, {pipeline_mode = #tpu.pipeline_mode<synchronous>, transform_indices = @transform_4, window_bounds = array<i64: 32, 32>}, {pipeline_mode = #tpu.pipeline_mode<synchronous>, transform_indices = @transform_5, window_bounds = array<i64: 32, 1>}, {pipeline_mode = #tpu.pipeline_mode<synchronous>, transform_indices = @transform_6, window_bounds = array<i64: 8, 32>}, {pipeline_mode = #tpu.pipeline_mode<synchronous>, transform_indices = @transform_7, window_bounds = array<i64: 8, 1>}, {pipeline_mode = #tpu.pipeline_mode<synchronous>, transform_indices = @transform_8, window_bounds = array<i64: 10, 32>}, {transform_indices = @transform_9, window_bounds = array<i64: 32, 256>}, {transform_indices = @transform_10, window_bounds = array<i64: 1, 256>}, {transform_indices = @transform_11, window_bounds = array<i64: 1, 256>}, {transform_indices = @transform_12, window_bounds = array<i64: 1, 1, 128>}]} {
    %c0 = arith.constant 0 : index
    %0 = memref.load %arg1[%c0] : memref<1xi32, #tpu.memory_space<smem>>
    %c0_0 = arith.constant 0 : index
    %c0_1 = arith.constant 0 : index
    %1 = vector.load %arg2[%c0_0, %c0_1] : memref<3x256xf32, #tpu.memory_space<vmem>>, vector<3x256xf32>
    %2 = arith.truncf %1 : vector<3x256xf32> to vector<3x256xbf16>
    %c0_2 = arith.constant 0 : index
    %c0_3 = arith.constant 0 : index
    %3 = vector.load %arg4[%c0_2, %c0_3] : memref<32x3xbf16, #tpu.memory_space<vmem>>, vector<32x3xbf16>
    %cst = arith.constant dense<0.000000e+00> : vector<32x256xf32>
    %4 = tpu.matmul %3, %2, %cst {dimension_numbers = #tpu.dot_dimension_numbers<[1], [0], [0], [1], [0, 0, 1, 1], [], []>} : vector<32x3xbf16>, vector<3x256xbf16>, vector<32x256xf32> -> vector<32x256xf32>
    %c0_4 = arith.constant 0 : index
    %c0_5 = arith.constant 0 : index
    %5 = vector.load %arg5[%c0_4, %c0_5] : memref<32x1xf32, #tpu.memory_space<vmem>>, vector<32x1xf32>
    %6 = vector.broadcast %5 : vector<32x1xf32> to vector<32x256xf32>
    %7 = arith.addf %4, %6 : vector<32x256xf32>
    %cst_6 = arith.constant 0.000000e+00 : f32
    %8 = vector.broadcast %cst_6 : f32 to vector<32x256xf32>
    %9 = arith.maximumf %7, %8 : vector<32x256xf32>
    %c0_7 = arith.constant 0 : index
    %c0_8 = arith.constant 0 : index
    %10 = vector.load %arg6[%c0_7, %c0_8] : memref<32x32xbf16, #tpu.memory_space<vmem>>, vector<32x32xbf16>
    %11 = arith.truncf %9 : vector<32x256xf32> to vector<32x256xbf16>
    %cst_9 = arith.constant dense<0.000000e+00> : vector<32x256xf32>
    %12 = tpu.matmul %10, %11, %cst_9 {dimension_numbers = #tpu.dot_dimension_numbers<[1], [0], [0], [1], [0, 0, 1, 1], [], []>} : vector<32x32xbf16>, vector<32x256xbf16>, vector<32x256xf32> -> vector<32x256xf32>
    %c0_10 = arith.constant 0 : index
    %c0_11 = arith.constant 0 : index
    %13 = vector.load %arg7[%c0_10, %c0_11] : memref<32x1xf32, #tpu.memory_space<vmem>>, vector<32x1xf32>
    %14 = vector.broadcast %13 : vector<32x1xf32> to vector<32x256xf32>
    %15 = arith.addf %12, %14 : vector<32x256xf32>
    %c0_12 = arith.constant 0 : index
    %c0_13 = arith.constant 0 : index
    %16 = vector.load %arg11[%c0_12, %c0_13] : memref<32x256xf32, #tpu.memory_space<vmem>>, vector<32x256xf32>
    tpu.vector_store %arg11[%c0_12, %c0_13], %15 {strides = array<i32>} : memref<32x256xf32, #tpu.memory_space<vmem>>, vector<32x256xf32>,
    %17 = tpu.iota {dimensions = array<i32: 1>} : vector<1x256xi32>
    %c256_i32 = arith.constant 256 : i32
    %18 = arith.muli %arg0, %c256_i32 : i32
    %19 = vector.broadcast %18 : i32 to vector<1x256xi32>
    %20 = arith.addi %17, %19 : vector<1x256xi32>
    %21 = vector.broadcast %0 : i32 to vector<1x256xi32>
    %22 = arith.cmpi slt, %20, %21 : vector<1x256xi32>
    %23 = arith.extui %22 : vector<1x256xi1> to vector<1x256xi32>
    %24 = arith.sitofp %23 : vector<1x256xi32> to vector<1x256xf32>
    %25 = arith.truncf %15 : vector<32x256xf32> to vector<32x256xbf16>
    %c0_14 = arith.constant 0 : index
    %c0_15 = arith.constant 0 : index
    %26 = vector.load %arg8[%c0_14, %c0_15] : memref<8x32xbf16, #tpu.memory_space<vmem>>, vector<8x32xbf16>
    %cst_16 = arith.constant dense<0.000000e+00> : vector<8x256xf32>
    %27 = tpu.matmul %26, %25, %cst_16 {dimension_numbers = #tpu.dot_dimension_numbers<[1], [0], [0], [1], [0, 0, 1, 1], [], []>} : vector<8x32xbf16>, vector<32x256xbf16>, vector<8x256xf32> -> vector<8x256xf32>
    %c0_17 = arith.constant 0 : index
    %c0_18 = arith.constant 0 : index
    %28 = vector.load %arg9[%c0_17, %c0_18] : memref<8x1xf32, #tpu.memory_space<vmem>>, vector<8x1xf32>
    %29 = vector.broadcast %28 : vector<8x1xf32> to vector<8x256xf32>
    %30 = arith.addf %27, %29 : vector<8x256xf32>
    %31 = tpu.iota {dimensions = array<i32: 0>} : vector<8x256xi32>
    %cst_19 = arith.constant dense<0xFF800000> : vector<256xf32>
    %32 = vector.multi_reduction <maximumf>, %30, %cst_19 [0] : vector<8x256xf32> to vector<256xf32>
    %33 = vector.shape_cast %32 : vector<256xf32> to vector<1x256xf32>
    %34 = vector.broadcast %33 : vector<1x256xf32> to vector<8x256xf32>
    %35 = arith.cmpf oeq, %30, %34 : vector<8x256xf32>
    %c8_i32 = arith.constant 8 : i32
    %36 = vector.broadcast %c8_i32 : i32 to vector<8x256xi32>
    %37 = arith.select %35, %31, %36 : vector<8x256xi1>, vector<8x256xi32>
    %cst_20 = arith.constant dense<2147483647> : vector<256xi32>
    %38 = vector.multi_reduction <minsi>, %37, %cst_20 [0] : vector<8x256xi32> to vector<256xi32>
    %39 = vector.shape_cast %38 : vector<256xi32> to vector<1x256xi32>
    %c0_21 = arith.constant 0 : index
    %c0_22 = arith.constant 0 : index
    %40 = vector.load %arg12[%c0_21, %c0_22] : memref<1x256xi32, #tpu.memory_space<vmem>>, vector<1x256xi32>
    tpu.vector_store %arg12[%c0_21, %c0_22], %39 {strides = array<i32>} : memref<1x256xi32, #tpu.memory_space<vmem>>, vector<1x256xi32>,
    %c0_23 = arith.constant 0 : index
    %c0_24 = arith.constant 0 : index
    %41 = vector.load %arg3[%c0_23, %c0_24] : memref<1x256xi32, #tpu.memory_space<vmem>>, vector<1x256xi32>
    %42 = vector.broadcast %33 : vector<1x256xf32> to vector<8x256xf32>
    %43 = arith.subf %30, %42 : vector<8x256xf32>
    %44 = math.exp %43 : vector<8x256xf32>
    %cst_25 = arith.constant dense<0.000000e+00> : vector<256xf32>
    %45 = vector.multi_reduction <add>, %44, %cst_25 [0] : vector<8x256xf32> to vector<256xf32>
    %46 = vector.shape_cast %45 : vector<256xf32> to vector<1x256xf32>
    %47 = math.log %46 : vector<1x256xf32>
    %48 = arith.addf %33, %47 : vector<1x256xf32>
    %49 = vector.broadcast %41 : vector<1x256xi32> to vector<8x256xi32>
    %50 = arith.cmpi eq, %31, %49 : vector<8x256xi32>
    %cst_26 = arith.constant 0.000000e+00 : f32
    %51 = vector.broadcast %cst_26 : f32 to vector<8x256xf32>
    %52 = arith.select %50, %30, %51 : vector<8x256xi1>, vector<8x256xf32>
    %cst_27 = arith.constant dense<0.000000e+00> : vector<256xf32>
    %53 = vector.multi_reduction <add>, %52, %cst_27 [0] : vector<8x256xf32> to vector<256xf32>
    %54 = vector.shape_cast %53 : vector<256xf32> to vector<1x256xf32>
    %55 = arith.subf %48, %54 : vector<1x256xf32>
    %c0_i32 = arith.constant 0 : i32
    %56 = vector.broadcast %c0_i32 : i32 to vector<1x256xi32>
    %57 = arith.cmpi sge, %41, %56 : vector<1x256xi32>
    %c8_i32_28 = arith.constant 8 : i32
    %58 = vector.broadcast %c8_i32_28 : i32 to vector<1x256xi32>
    %59 = arith.cmpi slt, %41, %58 : vector<1x256xi32>
    %60 = arith.andi %57, %59 : vector<1x256xi1>
    %61 = arith.andi %60, %22 : vector<1x256xi1>
    %62 = arith.extui %61 : vector<1x256xi1> to vector<1x256xi32>
    %63 = arith.sitofp %62 : vector<1x256xi32> to vector<1x256xf32>
    %64 = arith.mulf %55, %63 : vector<1x256xf32>
    %65 = vector.shape_cast %64 : vector<1x256xf32> to vector<1x1x256xf32>
    %cst_29 = arith.constant dense<0.000000e+00> : vector<1xf32>
    %66 = vector.multi_reduction <add>, %65, %cst_29 [1, 2] : vector<1x1x256xf32> to vector<1xf32>
    %67 = vector.shape_cast %66 : vector<1xf32> to vector<1x1x1xf32>
    %68 = vector.extract %67[0, 0, 0] : f32 from vector<1x1x1xf32>
    %69 = vector.shape_cast %63 : vector<1x256xf32> to vector<1x1x256xf32>
    %cst_30 = arith.constant dense<0.000000e+00> : vector<1xf32>
    %70 = vector.multi_reduction <add>, %69, %cst_30 [1, 2] : vector<1x1x256xf32> to vector<1xf32>
    %71 = vector.shape_cast %70 : vector<1xf32> to vector<1x1x1xf32>
    %72 = vector.extract %71[0, 0, 0] : f32 from vector<1x1x1xf32>
    %73 = arith.mulf %15, %15 : vector<32x256xf32>
    %cst_31 = arith.constant dense<0.000000e+00> : vector<256xf32>
    %74 = vector.multi_reduction <add>, %73, %cst_31 [0] : vector<32x256xf32> to vector<256xf32>
    %75 = vector.shape_cast %74 : vector<256xf32> to vector<1x256xf32>
    %cst_32 = arith.constant 9.99999996E-13 : f32
    %76 = vector.broadcast %cst_32 : f32 to vector<1x256xf32>
    %77 = arith.addf %75, %76 : vector<1x256xf32>
    %78 = math.rsqrt %77 : vector<1x256xf32>
    %79 = vector.broadcast %78 : vector<1x256xf32> to vector<32x256xf32>
    %80 = arith.mulf %15, %79 : vector<32x256xf32>
    %c0_33 = arith.constant 0 : index
    %c0_34 = arith.constant 0 : index
    %81 = vector.load %arg10[%c0_33, %c0_34] : memref<10x32xbf16, #tpu.memory_space<vmem>>, vector<10x32xbf16>
    %82 = arith.truncf %80 : vector<32x256xf32> to vector<32x256xbf16>
    %cst_35 = arith.constant dense<0.000000e+00> : vector<10x256xf32>
    %83 = tpu.matmul %81, %82, %cst_35 {dimension_numbers = #tpu.dot_dimension_numbers<[1], [0], [0], [1], [0, 0, 1, 1], [], []>} : vector<10x32xbf16>, vector<32x256xbf16>, vector<10x256xf32> -> vector<10x256xf32>
    %84 = tpu.iota {dimensions = array<i32: 0>} : vector<10x256xi32>
    %cst_36 = arith.constant dense<0xFF800000> : vector<256xf32>
    %85 = vector.multi_reduction <maximumf>, %83, %cst_36 [0] : vector<10x256xf32> to vector<256xf32>
    %86 = vector.shape_cast %85 : vector<256xf32> to vector<1x256xf32>
    %87 = vector.broadcast %86 : vector<1x256xf32> to vector<10x256xf32>
    %88 = arith.cmpf oeq, %83, %87 : vector<10x256xf32>
    %c10_i32 = arith.constant 10 : i32
    %89 = vector.broadcast %c10_i32 : i32 to vector<10x256xi32>
    %90 = arith.select %88, %84, %89 : vector<10x256xi1>, vector<10x256xi32>
    %cst_37 = arith.constant dense<2147483647> : vector<256xi32>
    %91 = vector.multi_reduction <minsi>, %90, %cst_37 [0] : vector<10x256xi32> to vector<256xi32>
    %92 = vector.shape_cast %91 : vector<256xi32> to vector<1x256xi32>
    %c0_38 = arith.constant 0 : index
    %c0_39 = arith.constant 0 : index
    %93 = vector.load %arg13[%c0_38, %c0_39] : memref<1x256xi32, #tpu.memory_space<vmem>>, vector<1x256xi32>
    tpu.vector_store %arg13[%c0_38, %c0_39], %92 {strides = array<i32>} : memref<1x256xi32, #tpu.memory_space<vmem>>, vector<1x256xi32>,
    %94 = arith.mulf %86, %24 : vector<1x256xf32>
    %95 = vector.shape_cast %94 : vector<1x256xf32> to vector<1x1x256xf32>
    %cst_40 = arith.constant dense<0.000000e+00> : vector<1xf32>
    %96 = vector.multi_reduction <add>, %95, %cst_40 [1, 2] : vector<1x1x256xf32> to vector<1xf32>
    %97 = vector.shape_cast %96 : vector<1xf32> to vector<1x1x1xf32>
    %98 = vector.extract %97[0, 0, 0] : f32 from vector<1x1x1xf32>
    %99 = tpu.iota {dimensions = array<i32: 2>} : vector<1x1x128xi32>
    %c0_i32_41 = arith.constant 0 : i32
    %100 = vector.broadcast %c0_i32_41 : i32 to vector<1x1x128xi32>
    %101 = arith.cmpi eq, %99, %100 : vector<1x1x128xi32>
    %c1_i32 = arith.constant 1 : i32
    %102 = vector.broadcast %c1_i32 : i32 to vector<1x1x128xi32>
    %103 = arith.cmpi eq, %99, %102 : vector<1x1x128xi32>
    %c2_i32 = arith.constant 2 : i32
    %104 = vector.broadcast %c2_i32 : i32 to vector<1x1x128xi32>
    %105 = arith.cmpi eq, %99, %104 : vector<1x1x128xi32>
    %cst_42 = arith.constant 0.000000e+00 : f32
    %106 = vector.broadcast %98 : f32 to vector<1x1x128xf32>
    %107 = vector.broadcast %cst_42 : f32 to vector<1x1x128xf32>
    %108 = arith.select %105, %106, %107 : vector<1x1x128xi1>, vector<1x1x128xf32>
    %109 = vector.broadcast %72 : f32 to vector<1x1x128xf32>
    %110 = arith.select %103, %109, %108 : vector<1x1x128xi1>, vector<1x1x128xf32>
    %111 = vector.broadcast %68 : f32 to vector<1x1x128xf32>
    %112 = arith.select %101, %111, %110 : vector<1x1x128xi1>, vector<1x1x128xf32>
    %c0_43 = arith.constant 0 : index
    %c0_44 = arith.constant 0 : index
    %c0_45 = arith.constant 0 : index
    %113 = vector.load %arg14[%c0_43, %c0_44, %c0_45] : memref<1x1x128xf32, #tpu.memory_space<vmem>>, vector<1x1x128xf32>
    tpu.vector_store %arg14[%c0_43, %c0_44, %c0_45], %112 {strides = array<i32>} : memref<1x1x128xf32, #tpu.memory_space<vmem>>, vector<1x1x128xf32>,
    return
  }
  func.func @transform_0(%arg0: i32, %arg1: memref<1xi32, #tpu.memory_space<smem>>) -> (i32, i32) {
    %c0_i32 = arith.constant 0 : i32
    %c0_i32_0 = arith.constant 0 : i32
    return %c0_i32, %arg0 : i32, i32
  }
  func.func @transform_1(%arg0: i32, %arg1: memref<1xi32, #tpu.memory_space<smem>>) -> (i32, i32) {
    %c0_i32 = arith.constant 0 : i32
    %c0_i32_0 = arith.constant 0 : i32
    return %c0_i32, %arg0 : i32, i32
  }
  func.func @transform_2(%arg0: i32, %arg1: memref<1xi32, #tpu.memory_space<smem>>) -> (i32, i32) {
    %c0_i32 = arith.constant 0 : i32
    %c0_i32_0 = arith.constant 0 : i32
    %c0_i32_1 = arith.constant 0 : i32
    return %c0_i32, %c0_i32_0 : i32, i32
  }
  func.func @transform_3(%arg0: i32, %arg1: memref<1xi32, #tpu.memory_space<smem>>) -> (i32, i32) {
    %c0_i32 = arith.constant 0 : i32
    %c0_i32_0 = arith.constant 0 : i32
    %c0_i32_1 = arith.constant 0 : i32
    return %c0_i32, %c0_i32_0 : i32, i32
  }
  func.func @transform_4(%arg0: i32, %arg1: memref<1xi32, #tpu.memory_space<smem>>) -> (i32, i32) {
    %c0_i32 = arith.constant 0 : i32
    %c0_i32_0 = arith.constant 0 : i32
    %c0_i32_1 = arith.constant 0 : i32
    return %c0_i32, %c0_i32_0 : i32, i32
  }
  func.func @transform_5(%arg0: i32, %arg1: memref<1xi32, #tpu.memory_space<smem>>) -> (i32, i32) {
    %c0_i32 = arith.constant 0 : i32
    %c0_i32_0 = arith.constant 0 : i32
    %c0_i32_1 = arith.constant 0 : i32
    return %c0_i32, %c0_i32_0 : i32, i32
  }
  func.func @transform_6(%arg0: i32, %arg1: memref<1xi32, #tpu.memory_space<smem>>) -> (i32, i32) {
    %c0_i32 = arith.constant 0 : i32
    %c0_i32_0 = arith.constant 0 : i32
    %c0_i32_1 = arith.constant 0 : i32
    return %c0_i32, %c0_i32_0 : i32, i32
  }
  func.func @transform_7(%arg0: i32, %arg1: memref<1xi32, #tpu.memory_space<smem>>) -> (i32, i32) {
    %c0_i32 = arith.constant 0 : i32
    %c0_i32_0 = arith.constant 0 : i32
    %c0_i32_1 = arith.constant 0 : i32
    return %c0_i32, %c0_i32_0 : i32, i32
  }
  func.func @transform_8(%arg0: i32, %arg1: memref<1xi32, #tpu.memory_space<smem>>) -> (i32, i32) {
    %c0_i32 = arith.constant 0 : i32
    %c0_i32_0 = arith.constant 0 : i32
    %c0_i32_1 = arith.constant 0 : i32
    return %c0_i32, %c0_i32_0 : i32, i32
  }
  func.func @transform_9(%arg0: i32, %arg1: memref<1xi32, #tpu.memory_space<smem>>) -> (i32, i32) {
    %c0_i32 = arith.constant 0 : i32
    %c0_i32_0 = arith.constant 0 : i32
    return %c0_i32, %arg0 : i32, i32
  }
  func.func @transform_10(%arg0: i32, %arg1: memref<1xi32, #tpu.memory_space<smem>>) -> (i32, i32) {
    %c0_i32 = arith.constant 0 : i32
    %c0_i32_0 = arith.constant 0 : i32
    return %c0_i32, %arg0 : i32, i32
  }
  func.func @transform_11(%arg0: i32, %arg1: memref<1xi32, #tpu.memory_space<smem>>) -> (i32, i32) {
    %c0_i32 = arith.constant 0 : i32
    %c0_i32_0 = arith.constant 0 : i32
    return %c0_i32, %arg0 : i32, i32
  }
  func.func @transform_12(%arg0: i32, %arg1: memref<1xi32, #tpu.memory_space<smem>>) -> (i32, i32, i32) {
    %c0_i32 = arith.constant 0 : i32
    %c0_i32_0 = arith.constant 0 : i32
    %c0_i32_1 = arith.constant 0 : i32
    return %arg0, %c0_i32, %c0_i32_0 : i32, i32, i32
  }
}

</mosaic_0001>

<llo_original>
// kernel: stego_wrapper_forward.1
$region0: #{stego_wrapper_forward.1}
  #allocation0 [shape = 'u32[]', space=smem, size = 0x4, offset = 0x4, fixed_abs, tag = 'smem constant byte address 0x4 - core index']
  #allocation1 [shape = 'u32[72,128]{1,0:T(1,128)}', space=vmem, size = 0x9000, scoped, tag = 'internal scratch']
  #allocation2 [shape = 's32[1]{0}', space=sflag, size = 0x4, scoped, tag = 'scoped memory for stego_wrapper_forward.1']
  #allocation3 [shape = 's32[1]{0:T(128)S(6)}', space=smem, size = 0x200, scoped, tag = 'prefetched SMEM operand 0']
  %s0 = inlined_call_operand.<no memory space> [shape: s32[1], index: 0, kind: input, shape index: {}]
  %s1 = inlined_call_operand.vmem [shape: f32[3,512], index: 1, kind: input, shape index: {}]
  %s2 = inlined_call_operand.vmem [shape: s32[1,512], index: 2, kind: input, shape index: {}]
  %s3 = inlined_call_operand.vmem [shape: bf16[32,3], index: 3, kind: input, shape index: {}]
  %s4 = inlined_call_operand.vmem [shape: f32[32,1], index: 4, kind: input, shape index: {}]
  %s5 = inlined_call_operand.vmem [shape: bf16[32,32], index: 5, kind: input, shape index: {}]
  %s6 = inlined_call_operand.vmem [shape: f32[32,1], index: 6, kind: input, shape index: {}]
  %s7 = inlined_call_operand.vmem [shape: bf16[8,32], index: 7, kind: input, shape index: {}]
  %s8 = inlined_call_operand.vmem [shape: f32[8,1], index: 8, kind: input, shape index: {}]
  %s9 = inlined_call_operand.vmem [shape: bf16[10,32], index: 9, kind: input, shape index: {}]
  %s10 = inlined_call_operand.vmem [shape: f32[32,512], index: 10, kind: output, shape index: {0}]
  %s11 = inlined_call_operand.vmem [shape: s32[1,512], index: 11, kind: output, shape index: {1}]
  %s12 = inlined_call_operand.vmem [shape: s32[1,512], index: 12, kind: output, shape index: {2}]
  %s13 = inlined_call_operand.vmem [shape: f32[2,1,128], index: 13, kind: output, shape index: {3}]
  %14 = xla_tuple %s10, %s11, %s12, %s13
  %s15 = sld [smem:[#allocation0]]
  $region112: #{stego_wrapper_forward.1} parent=0
    _
  %s17 = ssub.s32 1, %s15
  %s18 = scalar_select 0, %s17, %s15
  %19 = sst [smem:[#allocation3]] %s0
  $region1: #{stego_wrapper_forward.1} parent=0
    #allocation4 [shape = 'u8[65536]{0}', space=vmem, size = 0x10000, scoped, tag = 'output window, operand 0']
    loop: start=0, step=1, limit=4
    $region2: #{stego_wrapper_forward.1} parent=1 // loop_pre_header
      _
    $region3: #{stego_wrapper_forward.1} parent=1 // loop_header
      %s21 = sphi 0, %s25
      %p22 = scmp.ge.s32.totalorder %s21, 4
      %s31 = sphi 0, %s33
      %s34 = sphi 0, %s31
      %s35 = sphi 0, %s34
      %s51 = sphi 0, %s35
      %s57 = sphi 0, %s59
      %s60 = sphi 0, %s57
      %s61 = sphi 0, %s60
      %s77 = sphi 0, %s61
      %s81 = sphi 0, %s81
      %s83 = sphi 0, %s81
      %s84 = sphi 0, %s83
      %s98 = sphi 0, %s84
      %s102 = sphi 0, %s102
      %s104 = sphi 0, %s102
      %s105 = sphi 0, %s104
      %s119 = sphi 0, %s105
      %s123 = sphi 0, %s123
      %s125 = sphi 0, %s123
      %s126 = sphi 0, %s125
      %s140 = sphi 0, %s126
      %s144 = sphi 0, %s144
      %s146 = sphi 0, %s144
      %s147 = sphi 0, %s146
      %s161 = sphi 0, %s147
      %s165 = sphi 0, %s165
      %s167 = sphi 0, %s165
      %s168 = sphi 0, %s167
      %s182 = sphi 0, %s168
      %s186 = sphi 0, %s186
      %s188 = sphi 0, %s186
      %s189 = sphi 0, %s188
      %s203 = sphi 0, %s189
      %s207 = sphi 0, %s207
      %s209 = sphi 0, %s207
      %s210 = sphi 0, %s209
      %s224 = sphi 0, %s210
      %s230 = sphi 0, %s232
      %s233 = sphi 0, %s230
      %s234 = sphi 0, %s233
      %s250 = sphi 0, %s234
      %s256 = sphi 0, %s258
      %s259 = sphi 0, %s256
      %s260 = sphi 0, %s259
      %s276 = sphi 0, %s260
      %s282 = sphi 0, %s284
      %s285 = sphi 0, %s282
      %s286 = sphi 0, %s285
      %s302 = sphi 0, %s286
      %s308 = sphi 0, %s310
      %s311 = sphi 0, %s308
      %s312 = sphi 0, %s311
      %s328 = sphi 0, %s312
    $region4: #{stego_wrapper_forward.1} parent=1 // loop_header_branch
      %24 = sbr.rel (%p22) target = $region8
    $region5: #{stego_wrapper_forward.1} parent=1 // loop_body
      %s26 = ssub.s32 %s21, 1
      %s27 = ssub.s32 %s21, 2
      %s28 = sadd.s32 %s21, 1
      %s29 = ssub.s32 %s21, %s28
      %p30 = scmp.eq.s32.totalorder %s29, 0
      %s32 = sadd.s32 %s31, 1
      %s33 = scalar_select %p30, %s31, %s32
      %p36 = pneg %p30
      %p37 = scmp.eq.s32.totalorder %s21, 1
      %p38 = por %p36, %p37
      %p39 = scmp.ne.s32.totalorder %s31, %s34
      %p40 = scmp.eq.s32.totalorder %s21, 0
      %p41 = por %p39, %p40
      %p42 = scmp.ne.s32.totalorder %s31, %s34
      %p43 = scmp.eq.s32.totalorder %s26, 1
      %p44 = por %p42, %p43
      %p45 = scmp.ne.s32.totalorder %s34, %s35
      %p46 = scmp.eq.s32.totalorder %s26, 0
      %p47 = por %p45, %p46
      %p48 = scmp.ne.s32.totalorder %s34, %s35
      %p49 = scmp.eq.s32.totalorder %s27, 1
      %p50 = por %p48, %p49
      %p52 = scmp.ne.s32.totalorder %s35, %s51
      %p53 = scmp.eq.s32.totalorder %s27, 0
      %p54 = por %p52, %p53
      %s55 = ssub.s32 %s21, %s28
      %p56 = scmp.eq.s32.totalorder %s55, 0
      %s58 = sadd.s32 %s57, 1
      %s59 = scalar_select %p56, %s57, %s58
      %p62 = pneg %p56
      %p63 = scmp.eq.s32.totalorder %s21, 1
      %p64 = por %p62, %p63
      %p65 = scmp.ne.s32.totalorder %s57, %s60
      %p66 = scmp.eq.s32.totalorder %s21, 0
      %p67 = por %p65, %p66
      %p68 = scmp.ne.s32.totalorder %s57, %s60
      %p69 = scmp.eq.s32.totalorder %s26, 1
      %p70 = por %p68, %p69
      %p71 = scmp.ne.s32.totalorder %s60, %s61
      %p72 = scmp.eq.s32.totalorder %s26, 0
      %p73 = por %p71, %p72
      %p74 = scmp.ne.s32.totalorder %s60, %s61
      %p75 = scmp.eq.s32.totalorder %s27, 1
      %p76 = por %p74, %p75
      %p78 = scmp.ne.s32.totalorder %s61, %s77
      %p79 = scmp.eq.s32.totalorder %s27, 0
      %p80 = por %p78, %p79
      %s82 = sadd.s32 %s81, 1
      %p85 = scmp.eq.s32.totalorder %s21, 1
      %p86 = scmp.ne.s32.totalorder %s81, %s83
      %p87 = scmp.eq.s32.totalorder %s21, 0
      %p88 = por %p86, %p87
      %p89 = scmp.ne.s32.totalorder %s81, %s83
      %p90 = scmp.eq.s32.totalorder %s26, 1
      %p91 = por %p89, %p90
      %p92 = scmp.ne.s32.totalorder %s83, %s84
      %p93 = scmp.eq.s32.totalorder %s26, 0
      %p94 = por %p92, %p93
      %p95 = scmp.ne.s32.totalorder %s83, %s84
      %p96 = scmp.eq.s32.totalorder %s27, 1
      %p97 = por %p95, %p96
      %p99 = scmp.ne.s32.totalorder %s84, %s98
      %p100 = scmp.eq.s32.totalorder %s27, 0
      %p101 = por %p99, %p100
      %s103 = sadd.s32 %s102, 1
      %p106 = scmp.eq.s32.totalorder %s21, 1
      %p107 = scmp.ne.s32.totalorder %s102, %s104
      %p108 = scmp.eq.s32.totalorder %s21, 0
      %p109 = por %p107, %p108
      %p110 = scmp.ne.s32.totalorder %s102, %s104
      %p111 = scmp.eq.s32.totalorder %s26, 1
      %p112 = por %p110, %p111
      %p113 = scmp.ne.s32.totalorder %s104, %s105
      %p114 = scmp.eq.s32.totalorder %s26, 0
      %p115 = por %p113, %p114
      %p116 = scmp.ne.s32.totalorder %s104, %s105
      %p117 = scmp.eq.s32.totalorder %s27, 1
      %p118 = por %p116, %p117
      %p120 = scmp.ne.s32.totalorder %s105, %s119
      %p121 = scmp.eq.s32.totalorder %s27, 0
      %p122 = por %p120, %p121
      %s124 = sadd.s32 %s123, 1
      %p127 = scmp.eq.s32.totalorder %s21, 1
      %p128 = scmp.ne.s32.totalorder %s123, %s125
      %p129 = scmp.eq.s32.totalorder %s21, 0
      %p130 = por %p128, %p129
      %p131 = scmp.ne.s32.totalorder %s123, %s125
      %p132 = scmp.eq.s32.totalorder %s26, 1
      %p133 = por %p131, %p132
      %p134 = scmp.ne.s32.totalorder %s125, %s126
      %p135 = scmp.eq.s32.totalorder %s26, 0
      %p136 = por %p134, %p135
      %p137 = scmp.ne.s32.totalorder %s125, %s126
      %p138 = scmp.eq.s32.totalorder %s27, 1
      %p139 = por %p137, %p138
      %p141 = scmp.ne.s32.totalorder %s126, %s140
      %p142 = scmp.eq.s32.totalorder %s27, 0
      %p143 = por %p141, %p142
      %s145 = sadd.s32 %s144, 1
      %p148 = scmp.eq.s32.totalorder %s21, 1
      %p149 = scmp.ne.s32.totalorder %s144, %s146
      %p150 = scmp.eq.s32.totalorder %s21, 0
      %p151 = por %p149, %p150
      %p152 = scmp.ne.s32.totalorder %s144, %s146
      %p153 = scmp.eq.s32.totalorder %s26, 1
      %p154 = por %p152, %p153
      %p155 = scmp.ne.s32.totalorder %s146, %s147
      %p156 = scmp.eq.s32.totalorder %s26, 0
      %p157 = por %p155, %p156
      %p158 = scmp.ne.s32.totalorder %s146, %s147
      %p159 = scmp.eq.s32.totalorder %s27, 1
      %p160 = por %p158, %p159
      %p162 = scmp.ne.s32.totalorder %s147, %s161
      %p163 = scmp.eq.s32.totalorder %s27, 0
      %p164 = por %p162, %p163
      %s166 = sadd.s32 %s165, 1
      %p169 = scmp.eq.s32.totalorder %s21, 1
      %p170 = scmp.ne.s32.totalorder %s165, %s167
      %p171 = scmp.eq.s32.totalorder %s21, 0
      %p172 = por %p170, %p171
      %p173 = scmp.ne.s32.totalorder %s165, %s167
      %p174 = scmp.eq.s32.totalorder %s26, 1
      %p175 = por %p173, %p174
      %p176 = scmp.ne.s32.totalorder %s167, %s168
      %p177 = scmp.eq.s32.totalorder %s26, 0
      %p178 = por %p176, %p177
      %p179 = scmp.ne.s32.totalorder %s167, %s168
      %p180 = scmp.eq.s32.totalorder %s27, 1
      %p181 = por %p179, %p180
      %p183 = scmp.ne.s32.totalorder %s168, %s182
      %p184 = scmp.eq.s32.totalorder %s27, 0
      %p185 = por %p183, %p184
      %s187 = sadd.s32 %s186, 1
      %p190 = scmp.eq.s32.totalorder %s21, 1
      %p191 = scmp.ne.s32.totalorder %s186, %s188
      %p192 = scmp.eq.s32.totalorder %s21, 0
      %p193 = por %p191, %p192
      %p194 = scmp.ne.s32.totalorder %s186, %s188
      %p195 = scmp.eq.s32.totalorder %s26, 1
      %p196 = por %p194, %p195
      %p197 = scmp.ne.s32.totalorder %s188, %s189
      %p198 = scmp.eq.s32.totalorder %s26, 0
      %p199 = por %p197, %p198
      %p200 = scmp.ne.s32.totalorder %s188, %s189
      %p201 = scmp.eq.s32.totalorder %s27, 1
      %p202 = por %p200, %p201
      %p204 = scmp.ne.s32.totalorder %s189, %s203
      %p205 = scmp.eq.s32.totalorder %s27, 0
      %p206 = por %p204, %p205
      %s208 = sadd.s32 %s207, 1
      %p211 = scmp.eq.s32.totalorder %s21, 1
      %p212 = scmp.ne.s32.totalorder %s207, %s209
      %p213 = scmp.eq.s32.totalorder %s21, 0
      %p214 = por %p212, %p213
      %p215 = scmp.ne.s32.totalorder %s207, %s209
      %p216 = scmp.eq.s32.totalorder %s26, 1
      %p217 = por %p215, %p216
      %p218 = scmp.ne.s32.totalorder %s209, %s210
      %p219 = scmp.eq.s32.totalorder %s26, 0
      %p220 = por %p218, %p219
      %p221 = scmp.ne.s32.totalorder %s209, %s210
      %p222 = scmp.eq.s32.totalorder %s27, 1
      %p223 = por %p221, %p222
      %p225 = scmp.ne.s32.totalorder %s210, %s224
      %p226 = scmp.eq.s32.totalorder %s27, 0
      %p227 = por %p225, %p226
      %s228 = ssub.s32 %s21, %s28
      %p229 = scmp.eq.s32.totalorder %s228, 0
      %s231 = sadd.s32 %s230, 1
      %s232 = scalar_select %p229, %s230, %s231
      %p235 = pneg %p229
      %p236 = scmp.eq.s32.totalorder %s21, 1
      %p237 = por %p235, %p236
      %p238 = scmp.ne.s32.totalorder %s230, %s233
      %p239 = scmp.eq.s32.totalorder %s21, 0
      %p240 = por %p238, %p239
      %p241 = scmp.ne.s32.totalorder %s230, %s233
      %p242 = scmp.eq.s32.totalorder %s26, 1
      %p243 = por %p241, %p242
      %p244 = scmp.ne.s32.totalorder %s233, %s234
      %p245 = scmp.eq.s32.totalorder %s26, 0
      %p246 = por %p244, %p245
      %p247 = scmp.ne.s32.totalorder %s233, %s234
      %p248 = scmp.eq.s32.totalorder %s27, 1
      %p249 = por %p247, %p248
      %p251 = scmp.ne.s32.totalorder %s234, %s250
      %p252 = scmp.eq.s32.totalorder %s27, 0
      %p253 = por %p251, %p252
      %s254 = ssub.s32 %s21, %s28
      %p255 = scmp.eq.s32.totalorder %s254, 0
      %s257 = sadd.s32 %s256, 1
      %s258 = scalar_select %p255, %s256, %s257
      %p261 = pneg %p255
      %p262 = scmp.eq.s32.totalorder %s21, 1
      %p263 = por %p261, %p262
      %p264 = scmp.ne.s32.totalorder %s256, %s259
      %p265 = scmp.eq.s32.totalorder %s21, 0
      %p266 = por %p264, %p265
      %p267 = scmp.ne.s32.totalorder %s256, %s259
      %p268 = scmp.eq.s32.totalorder %s26, 1
      %p269 = por %p267, %p268
      %p270 = scmp.ne.s32.totalorder %s259, %s260
      %p271 = scmp.eq.s32.totalorder %s26, 0
      %p272 = por %p270, %p271
      %p273 = scmp.ne.s32.totalorder %s259, %s260
      %p274 = scmp.eq.s32.totalorder %s27, 1
      %p275 = por %p273, %p274
      %p277 = scmp.ne.s32.totalorder %s260, %s276
      %p278 = scmp.eq.s32.totalorder %s27, 0
      %p279 = por %p277, %p278
      %s280 = ssub.s32 %s21, %s28
      %p281 = scmp.eq.s32.totalorder %s280, 0
      %s283 = sadd.s32 %s282, 1
      %s284 = scalar_select %p281, %s282, %s283
      %p287 = pneg %p281
      %p288 = scmp.eq.s32.totalorder %s21, 1
      %p289 = por %p287, %p288
      %p290 = scmp.ne.s32.totalorder %s282, %s285
      %p291 = scmp.eq.s32.totalorder %s21, 0
      %p292 = por %p290, %p291
      %p293 = scmp.ne.s32.totalorder %s282, %s285
      %p294 = scmp.eq.s32.totalorder %s26, 1
      %p295 = por %p293, %p294
      %p296 = scmp.ne.s32.totalorder %s285, %s286
      %p297 = scmp.eq.s32.totalorder %s26, 0
      %p298 = por %p296, %p297
      %p299 = scmp.ne.s32.totalorder %s285, %s286
      %p300 = scmp.eq.s32.totalorder %s27, 1
      %p301 = por %p299, %p300
      %p303 = scmp.ne.s32.totalorder %s286, %s302
      %p304 = scmp.eq.s32.totalorder %s27, 0
      %p305 = por %p303, %p304
      %s306 = ssub.s32 %s21, %s28
      %p307 = scmp.eq.s32.totalorder %s306, 0
      %s309 = sadd.s32 %s308, 1
      %s310 = scalar_select %p307, %s308, %s309
      %p313 = pneg %p307
      %p314 = scmp.eq.s32.totalorder %s21, 1
      %p315 = por %p313, %p314
      %p316 = scmp.ne.s32.totalorder %s308, %s311
      %p317 = scmp.eq.s32.totalorder %s21, 0
      %p318 = por %p316, %p317
      %p319 = scmp.ne.s32.totalorder %s308, %s311
      %p320 = scmp.eq.s32.totalorder %s26, 1
      %p321 = por %p319, %p320
      %p322 = scmp.ne.s32.totalorder %s311, %s312
      %p323 = scmp.eq.s32.totalorder %s26, 0
      %p324 = por %p322, %p323
      %p325 = scmp.ne.s32.totalorder %s311, %s312
      %p326 = scmp.eq.s32.totalorder %s27, 1
      %p327 = por %p325, %p326
      %p329 = scmp.ne.s32.totalorder %s312, %s328
      %p330 = scmp.eq.s32.totalorder %s27, 0
      %p331 = por %p329, %p330
      %p332 = scmp.le.s32.totalorder 1, %s21
      %p333 = scmp.lt.s32.totalorder %s21, 3
      %p334 = pnand %p332, %p333
      %p335 = pneg %p334
      // Predicated region
      $region9: #{stego_wrapper_forward.1} parent=5 // pred_check
        _
      $region10: #{stego_wrapper_forward.1} parent=5 // pred_check_branch
        %337 = sbr.rel (%p334) target = $region12
      $region11: #{stego_wrapper_forward.1} parent=5 // pred_region
        %s338 = ssub.s32 %s21, 1
        // Predicated region
        $region13: #{stego_wrapper_forward.1} parent=11 // pred_check
          %p339 = pneg %p94
        $region14: #{stego_wrapper_forward.1} parent=11 // pred_check_branch
          %341 = sbr.rel (%p339) target = $region16
        $region15: #{stego_wrapper_forward.1} parent=11 // pred_region
          _
        $region16: #{stego_wrapper_forward.1} parent=11 // pred_fallthru
          _
        // Predicated region
        $region17: #{stego_wrapper_forward.1} parent=11 // pred_check
          %p342 = pneg %p115
        $region18: #{stego_wrapper_forward.1} parent=11 // pred_check_branch
          %344 = sbr.rel (%p342) target = $region20
        $region19: #{stego_wrapper_forward.1} parent=11 // pred_region
          _
        $region20: #{stego_wrapper_forward.1} parent=11 // pred_fallthru
          _
        // Predicated region
        $region21: #{stego_wrapper_forward.1} parent=11 // pred_check
          %p345 = pneg %p136
        $region22: #{stego_wrapper_forward.1} parent=11 // pred_check_branch
          %347 = sbr.rel (%p345) target = $region24
        $region23: #{stego_wrapper_forward.1} parent=11 // pred_region
          _
        $region24: #{stego_wrapper_forward.1} parent=11 // pred_fallthru
          _
        // Predicated region
        $region25: #{stego_wrapper_forward.1} parent=11 // pred_check
          %p348 = pneg %p157
        $region26: #{stego_wrapper_forward.1} parent=11 // pred_check_branch
          %350 = sbr.rel (%p348) target = $region28
        $region27: #{stego_wrapper_forward.1} parent=11 // pred_region
          _
        $region28: #{stego_wrapper_forward.1} parent=11 // pred_fallthru
          _
        // Predicated region
        $region29: #{stego_wrapper_forward.1} parent=11 // pred_check
          %p351 = pneg %p178
        $region30: #{stego_wrapper_forward.1} parent=11 // pred_check_branch
          %353 = sbr.rel (%p351) target = $region32
        $region31: #{stego_wrapper_forward.1} parent=11 // pred_region
          _
        $region32: #{stego_wrapper_forward.1} parent=11 // pred_fallthru
          _
        // Predicated region
        $region33: #{stego_wrapper_forward.1} parent=11 // pred_check
          %p354 = pneg %p199
        $region34: #{stego_wrapper_forward.1} parent=11 // pred_check_branch
          %356 = sbr.rel (%p354) target = $region36
        $region35: #{stego_wrapper_forward.1} parent=11 // pred_region
          _
        $region36: #{stego_wrapper_forward.1} parent=11 // pred_fallthru
          _
        // Predicated region
        $region37: #{stego_wrapper_forward.1} parent=11 // pred_check
          %p357 = pneg %p220
        $region38: #{stego_wrapper_forward.1} parent=11 // pred_check_branch
          %359 = sbr.rel (%p357) target = $region40
        $region39: #{stego_wrapper_forward.1} parent=11 // pred_region
          _
        $region40: #{stego_wrapper_forward.1} parent=11 // pred_fallthru
          _
      $region12: #{stego_wrapper_forward.1} parent=5 // pred_fallthru
        _
      %p360 = scmp.lt.s32.totalorder %s21, 2
      // Predicated region
      $region41: #{stego_wrapper_forward.1} parent=5 // pred_check
        %p361 = pneg %p360
      $region42: #{stego_wrapper_forward.1} parent=5 // pred_check_branch
        %363 = sbr.rel (%p361) target = $region44
      $region43: #{stego_wrapper_forward.1} parent=5 // pred_region
        // Predicated region
        $region45: #{stego_wrapper_forward.1} parent=43 // pred_check
          %p364 = pneg %p41
        $region46: #{stego_wrapper_forward.1} parent=43 // pred_check_branch
          %366 = sbr.rel (%p364) target = $region48
        $region47: #{stego_wrapper_forward.1} parent=43 // pred_region
          %s367 = smul.u32 2, %s21
          %p368 = scmp.lt.s32.totalorder %s367, 3
          %s369 = scalar_select %p368, %s367, 3
          %s370 = smul.addr %s369, 4
          %s371 = scalar_lea.vmem %s1, %s370
          %s372 = smul.u32 2, %s21
        $region48: #{stego_wrapper_forward.1} parent=43 // pred_fallthru
          _
        // Predicated region
        $region49: #{stego_wrapper_forward.1} parent=43 // pred_check
          %p373 = pneg %p67
        $region50: #{stego_wrapper_forward.1} parent=43 // pred_check_branch
          %375 = sbr.rel (%p373) target = $region52
        $region51: #{stego_wrapper_forward.1} parent=43 // pred_region
          %s376 = smul.u32 2, %s21
          %p377 = scmp.lt.s32.totalorder %s376, 3
          %s378 = scalar_select %p377, %s376, 3
          %s379 = scalar_lea.vmem %s2, %s378
          %s380 = smul.u32 2, %s21
        $region52: #{stego_wrapper_forward.1} parent=43 // pred_fallthru
          _
      $region44: #{stego_wrapper_forward.1} parent=5 // pred_fallthru
        _
      %p381 = scmp.le.s32.totalorder 1, %s21
      %p382 = scmp.lt.s32.totalorder %s21, 3
      %p383 = pnand %p381, %p382
      %p384 = pneg %p383
      // Predicated region
      $region53: #{stego_wrapper_forward.1} parent=5 // pred_check
        _
      $region54: #{stego_wrapper_forward.1} parent=5 // pred_check_branch
        %386 = sbr.rel (%p383) target = $region56
      $region55: #{stego_wrapper_forward.1} parent=5 // pred_region
        %s387 = ssub.s32 %s21, 1
        %s388 = smul.u32 2, %s26
        %p389 = scmp.lt.s32.totalorder %s388, 3
        %s390 = scalar_select %p389, %s388, 3
        %s391 = smul.addr %s390, 4
        %s392 = scalar_lea.vmem %s1, %s391
        %p393 = pneg %p47
        %p394 = pneg %p44
        %s395 = smul.u32 2, %s26
        %p396 = scmp.lt.s32.totalorder %s395, 3
        %s397 = scalar_select %p396, %s395, 3
        %s398 = scalar_lea.vmem %s2, %s397
        %p399 = pneg %p73
        %p400 = pneg %p70
        %p401 = pneg %p94
        %p402 = pneg %p91
        %p403 = pneg %p115
        %p404 = pneg %p112
        %p405 = pneg %p136
        %p406 = pneg %p133
        %p407 = pneg %p157
        %p408 = pneg %p154
        %p409 = pneg %p178
        %p410 = pneg %p175
        %p411 = pneg %p199
        %p412 = pneg %p196
        %p413 = pneg %p220
        %p414 = pneg %p217
        %p415 = pneg %p246
        %p416 = pneg %p243
        %s417 = sand.u32 %s233, 1
        %s418 = sand.u32 %s233, 1
        %s419 = smul.addr %s418, 64
        %s420 = scalar_lea.vmem [#allocation4], %s419
        %p421 = pneg %p272
        %p422 = pneg %p269
        %s423 = smul.u32 2, %s26
        %p424 = scmp.lt.s32.totalorder %s423, 3
        %s425 = scalar_select %p424, %s423, 3
        %s426 = scalar_lea.vmem %s11, %s425
        %p427 = pneg %p298
        %p428 = pneg %p295
        %s429 = smul.u32 2, %s26
        %p430 = scmp.lt.s32.totalorder %s429, 3
        %s431 = scalar_select %p430, %s429, 3
        %s432 = scalar_lea.vmem %s12, %s431
        %p433 = pneg %p324
        %p434 = pneg %p321
        %p435 = scmp.lt.s32.totalorder %s26, 1
        %s436 = scalar_select %p435, %s26, 1
        %s437 = scalar_lea.vmem %s13, %s436
        %s438 = smul.u32 2, %s26
        %p439 = scmp.lt.s32.totalorder %s438, 3
        %s440 = scalar_select %p439, %s438, 3
        %s441 = smul.addr %s440, 4
        %s442 = scalar_lea.vmem %s1, %s441
        %s443 = smul.u32 2, %s26
        %s444 = smul.u32 2, %s26
        %p445 = scmp.lt.s32.totalorder %s444, 3
        %s446 = scalar_select %p445, %s444, 3
        %s447 = scalar_lea.vmem %s2, %s446
        %s448 = smul.u32 2, %s26
        %s449 = smul.u32 2, %s26
        %s450 = smul.u32 2, %s26
        %p451 = scmp.lt.s32.totalorder %s450, 3
        %s452 = scalar_select %p451, %s450, 3
        %s453 = scalar_lea.vmem %s11, %s452
        %s454 = smul.u32 2, %s26
        %s455 = smul.u32 2, %s26
        %p456 = scmp.lt.s32.totalorder %s455, 3
        %s457 = scalar_select %p456, %s455, 3
        %s458 = scalar_lea.vmem %s12, %s457
        %s459 = smul.u32 2, %s26
        %p460 = scmp.lt.s32.totalorder %s26, 1
        %s461 = scalar_select %p460, %s26, 1
        %s462 = scalar_lea.vmem %s13, %s461
        %s464 = sld [smem:[#allocation3]]
        %v465 = vld [vmem:[%s442] sm:$0x77]
        %467 = vst [vmem:[#allocation1] ss:$2 sm:$0xff] %v465
        %v468 = vld.sshfl [vmem:[#allocation1] sm:$0xff pattern:$0x75316420]
        %v469 = vld.sshfl [vmem:[#allocation1 + $0x8] sm:$0xff pattern:$0x75316420]
        %v472 = vpack.c.bf16 %v468, %v468
        %v473 = vpack.c.bf16 %v469, %v469
        %v474 = vld [vmem:[%s3] sm:$0xf]
        %v475 = vld [vmem:[%s3 + $0x4] sm:$0xf]
        %v476 = vld [vmem:[%s3 + $0x8] sm:$0xf]
        %v477 = vld [vmem:[%s3 + $0xc] sm:$0xf]
        %v478 = vld [vmem:[%s4] sm:$0xff]
        %v479 = vld [vmem:[%s4 + $0x8] sm:$0xff]
        %v480 = vld [vmem:[%s4 + $0x10] sm:$0xff]
        %v481 = vld [vmem:[%s4 + $0x18] sm:$0xff]
        %483 = vset.pattern.permute.xlu0 0
        %484 = vperm.xlu0 %483, %v478
        %v485 = vpop.permute.xlu0 %484
        %488 = vset.pattern.permute.xlu0 0
        %489 = vperm.xlu0 %488, %v479
        %v490 = vpop.permute.xlu0 %489
        %493 = vset.pattern.permute.xlu0 0
        %494 = vperm.xlu0 %493, %v480
        %v495 = vpop.permute.xlu0 %494
        %498 = vset.pattern.permute.xlu0 0
        %499 = vperm.xlu0 %498, %v481
        %v500 = vpop.permute.xlu0 %499
        %v506 = vunpack.c.l.b16 %v474
        %v507 = vunpack.c.l.b16 %v475
        %v508 = vunpack.c.l.b16 %v476
        %v509 = vunpack.c.l.b16 %v477
        %v510 = vpack.c.b16 %v507, %v506
        %v511 = vpack.c.b16 %v509, %v508
        %vm512 = vcmask 23552
        %v514 = vsel %vm512, %v510, 0
        %v517 = vsel %vm512, %v511, 0
        %vm519 = vcmask 1040384
        %vm520 = vcmask 1041408
        %v521 = vsel %vm519, 4294967295, 65535
        %v522 = vsel %vm520, %v521, 0
        %v524 = vand.u32 %v472, %v522
        %v527 = vand.u32 %v473, %v522
        %529 = vmatpush.bf16.msra.mxu0 0
        %530 = vmatpush.bf16.msra.mxu0 0
        %531 = vmatpush.bf16.msra.mxu0 0
        %532 = vmatpush.bf16.msra.mxu0 0
        %533 = vmatpush.bf16.msra.mxu0 0
        %534 = vmatpush.bf16.msra.mxu0 0
        %535 = vmatpush.bf16.msra.mxu0 0
        %536 = vmatpush.bf16.msra.mxu0 %v524
        %537 = vmatmul.bf16.gmra.mxu0 %v514
        %v538 = vpop.f32.mrf.mxu0
        %v539 = vadd.f32 %v485, %v538
        %v540 = vpop.f32.mrf.mxu0
        %v541 = vadd.f32 %v490, %v540
        %542 = vmatmul.bf16.gmra.mxu0 %v517
        %v543 = vpop.f32.mrf.mxu0
        %v544 = vadd.f32 %v495, %v543
        %v545 = vpop.f32.mrf.mxu0
        %v546 = vadd.f32 %v500, %v545
        %547 = vdwg.mxu0
        %548 = vmatpush.bf16.msra.mxu0 0
        %549 = vmatpush.bf16.msra.mxu0 0
        %550 = vmatpush.bf16.msra.mxu0 0
        %551 = vmatpush.bf16.msra.mxu0 0
        %552 = vmatpush.bf16.msra.mxu0 0
        %553 = vmatpush.bf16.msra.mxu0 0
        %554 = vmatpush.bf16.msra.mxu0 0
        %555 = vmatpush.bf16.msra.mxu0 %v527
        %556 = vmatmul.bf16.gmra.mxu0 %v514
        %v557 = vpop.f32.mrf.mxu0
        %v558 = vadd.f32 %v485, %v557
        %v559 = vpop.f32.mrf.mxu0
        %v560 = vadd.f32 %v490, %v559
        %561 = vmatmul.bf16.gmra.mxu0 %v517
        %v562 = vpop.f32.mrf.mxu0
        %v563 = vadd.f32 %v495, %v562
        %v564 = vpop.f32.mrf.mxu0
        %v565 = vadd.f32 %v500, %v564
        %566 = vdwg.mxu0
        %v567 = vmax.f32 %v539, 0.0
        %v568 = vmax.f32 %v558, 0.0
        %v569 = vmax.f32 %v541, 0.0
        %v570 = vmax.f32 %v560, 0.0
        %v571 = vmax.f32 %v544, 0.0
        %v572 = vmax.f32 %v563, 0.0
        %v573 = vmax.f32 %v546, 0.0
        %v574 = vmax.f32 %v565, 0.0
        %v575 = vld [vmem:[%s5] sm:$0xf]
        %v576 = vld [vmem:[%s5 + $0x4] sm:$0xf]
        %v577 = vld [vmem:[%s5 + $0x8] sm:$0xf]
        %v578 = vld [vmem:[%s5 + $0xc] sm:$0xf]
        %v579 = vpack.c.bf16 %v569, %v567
        %v580 = vpack.c.bf16 %v570, %v568
        %v581 = vpack.c.bf16 %v573, %v571
        %v582 = vpack.c.bf16 %v574, %v572
        %v583 = vld [vmem:[%s6] sm:$0xff]
        %v584 = vld [vmem:[%s6 + $0x8] sm:$0xff]
        %v585 = vld [vmem:[%s6 + $0x10] sm:$0xff]
        %v586 = vld [vmem:[%s6 + $0x18] sm:$0xff]
        %588 = vset.pattern.permute.xlu0 0
        %589 = vperm.xlu0 %588, %v583
        %v590 = vpop.permute.xlu0 %589
        %593 = vset.pattern.permute.xlu0 0
        %594 = vperm.xlu0 %593, %v584
        %v595 = vpop.permute.xlu0 %594
        %598 = vset.pattern.permute.xlu0 0
        %599 = vperm.xlu0 %598, %v585
        %v600 = vpop.permute.xlu0 %599
        %603 = vset.pattern.permute.xlu0 0
        %604 = vperm.xlu0 %603, %v586
        %v605 = vpop.permute.xlu0 %604
        %v611 = vunpack.c.l.b16 %v575
        %v612 = vunpack.c.l.b16 %v576
        %v613 = vunpack.c.l.b16 %v577
        %v614 = vunpack.c.l.b16 %v578
        %v615 = vpack.c.b16 %v612, %v611
        %v616 = vpack.c.b16 %v614, %v613
        %vm617 = vcmask 261120
        %v619 = vsel %vm617, %v615, 0
        %v622 = vsel %vm617, %v616, 0
        %624 = vmatpush.bf16.msra.mxu0 0
        %625 = vmatpush.bf16.msra.mxu0 0
        %626 = vmatpush.bf16.msra.mxu0 0
        %627 = vmatpush.bf16.msra.mxu0 0
        %628 = vmatpush.bf16.msra.mxu0 0
        %629 = vmatpush.bf16.msra.mxu0 0
        %630 = vmatpush.bf16.msra.mxu0 %v581
        %631 = vmatpush.bf16.msra.mxu0 %v579
        %632 = vmatmul.bf16.gmra.mxu0 %v619
        %v633 = vpop.f32.mrf.mxu0
        %v634 = vadd.f32 %v590, %v633
        %v635 = vpop.f32.mrf.mxu0
        %v636 = vadd.f32 %v595, %v635
        %637 = vmatmul.bf16.gmra.mxu0 %v622
        %v638 = vpop.f32.mrf.mxu0
        %v639 = vadd.f32 %v600, %v638
        %v640 = vpop.f32.mrf.mxu0
        %v641 = vadd.f32 %v605, %v640
        %642 = vdwg.mxu0
        %643 = vmatpush.bf16.msra.mxu0 0
        %644 = vmatpush.bf16.msra.mxu0 0
        %645 = vmatpush.bf16.msra.mxu0 0
        %646 = vmatpush.bf16.msra.mxu0 0
        %647 = vmatpush.bf16.msra.mxu0 0
        %648 = vmatpush.bf16.msra.mxu0 0
        %649 = vmatpush.bf16.msra.mxu0 %v582
        %650 = vmatpush.bf16.msra.mxu0 %v580
        %651 = vmatmul.bf16.gmra.mxu0 %v619
        %v652 = vpop.f32.mrf.mxu0
        %v653 = vadd.f32 %v590, %v652
        %v654 = vpop.f32.mrf.mxu0
        %v655 = vadd.f32 %v595, %v654
        %656 = vmatmul.bf16.gmra.mxu0 %v622
        %v657 = vpop.f32.mrf.mxu0
        %v658 = vadd.f32 %v600, %v657
        %v659 = vpop.f32.mrf.mxu0
        %v660 = vadd.f32 %v605, %v659
        %661 = vdwg.mxu0
        %662 = vst [vmem:[%s420] sm:$0xff] %v634
        %663 = vst [vmem:[%s420 + $0x8] sm:$0xff] %v653
        %664 = vst [vmem:[%s420 + $0x10] sm:$0xff] %v636
        %665 = vst [vmem:[%s420 + $0x18] sm:$0xff] %v655
        %666 = vst [vmem:[%s420 + $0x20] sm:$0xff] %v639
        %667 = vst [vmem:[%s420 + $0x28] sm:$0xff] %v658
        %668 = vst [vmem:[%s420 + $0x30] sm:$0xff] %v641
        %669 = vst [vmem:[%s420 + $0x38] sm:$0xff] %v660
        %v670 = vlaneseq
        %v671 = vand.u32 %v670, 127
        %v672 = vadd.s32 %v671, 128
        %s673 = smul.u32 %s26, 256
        %v674 = vstv %s673
        %v675 = vadd.s32 %v671, %v674
        %v676 = vadd.s32 %v672, %v674
        %v677 = vstv %s464
        %vm678 = vcmp.lt.s32.totalorder %v675, %v677
        %vm679 = vcmp.lt.s32.totalorder %v676, %v677
        %v680 = vsel %vm678, 1, 0
        %v681 = vsel %vm679, 1, 0
        %v682 = vcvt.s32.f32 %v680
        %v683 = vcvt.s32.f32 %v681
        %v684 = vpack.c.bf16 %v636, %v634
        %v685 = vpack.c.bf16 %v655, %v653
        %v686 = vpack.c.bf16 %v641, %v639
        %v687 = vpack.c.bf16 %v660, %v658
        %v688 = vld [vmem:[%s7] sm:$0xf]
        %v689 = vld [vmem:[%s8] sm:$0xff]
        %691 = vset.pattern.permute.xlu0 0
        %692 = vperm.xlu0 %691, %v689
        %v693 = vpop.permute.xlu0 %692
        %v696 = vsel %vm617, %v688, 0
        %698 = vmatpush.bf16.msra.mxu0 0
        %699 = vmatpush.bf16.msra.mxu0 0
        %700 = vmatpush.bf16.msra.mxu0 0
        %701 = vmatpush.bf16.msra.mxu0 0
        %702 = vmatpush.bf16.msra.mxu0 0
        %703 = vmatpush.bf16.msra.mxu0 0
        %704 = vmatpush.bf16.msra.mxu0 %v686
        %705 = vmatpush.bf16.msra.mxu0 %v684
        %706 = vmatmul.bf16.gmra.mxu0 %v696
        %v707 = vpop.f32.mrf.mxu0
        %v708 = vadd.f32 %v693, %v707
        %v709 = vpop.f32.mrf.mxu0
        %710 = vdwg.mxu0
        %711 = vmatpush.bf16.msra.mxu0 0
        %712 = vmatpush.bf16.msra.mxu0 0
        %713 = vmatpush.bf16.msra.mxu0 0
        %714 = vmatpush.bf16.msra.mxu0 0
        %715 = vmatpush.bf16.msra.mxu0 0
        %716 = vmatpush.bf16.msra.mxu0 0
        %717 = vmatpush.bf16.msra.mxu0 %v687
        %718 = vmatpush.bf16.msra.mxu0 %v685
        %719 = vmatmul.bf16.gmra.mxu0 %v696
        %v720 = vpop.f32.mrf.mxu0
        %v721 = vadd.f32 %v693, %v720
        %v722 = vpop.f32.mrf.mxu0
        %723 = vdwg.mxu0
        %v724 = vlaneseq
        %v725 = vshrl.u32 %v724, 7
        %v726 = vrot.slane %v708, 4
        %v727 = vmax.f32 %v708, %v726
        %v728 = vrot.slane %v727, 2
        %v729 = vmax.f32 %v727, %v728
        %v730 = vrot.slane %v729, 1
        %v731 = vmax.f32 %v729, %v730
        %v732 = vrot.slane %v721, 4
        %v733 = vmax.f32 %v721, %v732
        %v734 = vrot.slane %v733, 2
        %v735 = vmax.f32 %v733, %v734
        %v736 = vrot.slane %v735, 1
        %v737 = vmax.f32 %v735, %v736
        %vm738 = vcmp.eq.f32.partialorder %v708, %v731
        %vm739 = vcmp.eq.f32.partialorder %v721, %v737
        %v740 = vsel %vm738, %v725, 8
        %v741 = vsel %vm739, %v725, 8
        %v742 = vrot.slane %v740, 4
        %vm743 = vcmp.lt.s32.totalorder %v740, %v742
        %v744 = vsel %vm743, %v740, %v742
        %v745 = vrot.slane %v744, 2
        %vm746 = vcmp.lt.s32.totalorder %v744, %v745
        %v747 = vsel %vm746, %v744, %v745
        %v748 = vrot.slane %v747, 1
        %vm749 = vcmp.lt.s32.totalorder %v747, %v748
        %v750 = vsel %vm749, %v747, %v748
        %v751 = vrot.slane %v741, 4
        %vm752 = vcmp.lt.s32.totalorder %v741, %v751
        %v753 = vsel %vm752, %v741, %v751
        %v754 = vrot.slane %v753, 2
        %vm755 = vcmp.lt.s32.totalorder %v753, %v754
        %v756 = vsel %vm755, %v753, %v754
        %v757 = vrot.slane %v756, 1
        %vm758 = vcmp.lt.s32.totalorder %v756, %v757
        %v759 = vsel %vm758, %v756, %v757
        %v760 = vrot.slane %v759, 7
        %v761 = vsel %vm519, %v750, %v760
        %v762 = vlaneseq
        %vm763 = vcmp.ge.s32.totalorder %v762, 0
        %vm764 = vcmp.lt.s32.totalorder %v762, 256
        %vm765 = vmand %vm763, %vm764
        %766 = vst.msk [vmem:[%s453] sm:$0x3] %vm765, %v761
        %v767 = vld [vmem:[%s447] sm:$0x3]
        %v768 = vsub.f32 %v708, %v731
        %v769 = vsub.f32 %v721, %v737
        %v770 = vmul.f32 %v768, 1.442695
        %v771 = vpow.pop %v770
        %v772 = vmul.f32 %v769, 1.442695
        %v773 = vpow.pop %v772
        %v774 = vrot.slane %v771, 4
        %v775 = vadd.f32 %v771, %v774
        %v776 = vrot.slane %v775, 2
        %v777 = vadd.f32 %v775, %v776
        %v778 = vrot.slane %v777, 1
        %v779 = vadd.f32 %v777, %v778
        %v780 = vrot.slane %v773, 4
        %v781 = vadd.f32 %v773, %v780
        %v782 = vrot.slane %v781, 2
        %v783 = vadd.f32 %v781, %v782
        %v784 = vrot.slane %v783, 1
        %v785 = vadd.f32 %v783, %v784
        %v786 = vlog2.pop %v779
        %v787 = vmul.f32 %v786, 0.6931472
        %v788 = vlog2.pop %v785
        %v789 = vmul.f32 %v788, 0.6931472
        %v790 = vadd.f32 %v731, %v787
        %v791 = vadd.f32 %v737, %v789
        %v792 = vperm.slane %v767, 0
        %v793 = vperm.slane %v767, 1
        %vm794 = vcmp.eq.s32.totalorder %v725, %v792
        %vm795 = vcmp.eq.s32.totalorder %v725, %v793
        %v796 = vsel %vm794, %v708, 0.0
        %v797 = vsel %vm795, %v721, 0.0
        %v798 = vrot.slane %v796, 4
        %v799 = vadd.f32 %v796, %v798
        %v800 = vrot.slane %v799, 2
        %v801 = vadd.f32 %v799, %v800
        %v802 = vrot.slane %v801, 1
        %v803 = vadd.f32 %v801, %v802
        %v804 = vrot.slane %v797, 4
        %v805 = vadd.f32 %v797, %v804
        %v806 = vrot.slane %v805, 2
        %v807 = vadd.f32 %v805, %v806
        %v808 = vrot.slane %v807, 1
        %v809 = vadd.f32 %v807, %v808
        %v810 = vsub.f32 %v790, %v803
        %v811 = vsub.f32 %v791, %v809
        %vm812 = vcmp.ge.s32.totalorder %v767, 0
        %vm813 = vcmp.lt.s32.totalorder %v767, 8
        %vm814 = vmand %vm812, %vm813
        %v815 = vrot.slane %v681, 7
        %v816 = vsel %vm519, %v680, %v815
        %vm817 = vcmp.ne.s32.totalorder %v816, 0
        %vm818 = vmand %vm814, %vm817
        %v819 = vsel %vm818, 1, 0
        %v820 = vcvt.s32.f32 %v819
        %v822 = vperm.slane %v820, 0
        %v823 = vperm.slane %v820, 1
        %v826 = vmul.f32 %v810, %v822
        %v827 = vmul.f32 %v811, %v823
        %v828 = vsel %vm519, %v826, 0.0
        %v829 = vsel %vm519, %v827, 0.0
        %v830 = vadd.f32 %v828, %v829
        %831 = vadd.xlane.f32.xlu0 %v830
        %v832 = vpop.xlane.xlu0 %831
        %v833 = vrot.slane %v832, 4
        %v834 = vadd.f32 %v832, %v833
        %v835 = vrot.slane %v834, 2
        %v836 = vadd.f32 %v834, %v835
        %v837 = vrot.slane %v836, 1
        %v838 = vadd.f32 %v836, %v837
        %s839 = vtos %v838
        %v840 = vsel %vm519, %v822, 0.0
        %v841 = vsel %vm519, %v823, 0.0
        %v842 = vadd.f32 %v840, %v841
        %843 = vadd.xlane.f32.xlu0 %v842
        %v844 = vpop.xlane.xlu0 %843
        %v845 = vrot.slane %v844, 4
        %v846 = vadd.f32 %v844, %v845
        %v847 = vrot.slane %v846, 2
        %v848 = vadd.f32 %v846, %v847
        %v849 = vrot.slane %v848, 1
        %v850 = vadd.f32 %v848, %v849
        %s851 = vtos %v850
        %v852 = vmul.f32 %v634, %v634
        %v853 = vmul.f32 %v653, %v653
        %v854 = vmul.f32 %v636, %v636
        %v855 = vmul.f32 %v655, %v655
        %v856 = vmul.f32 %v639, %v639
        %v857 = vmul.f32 %v658, %v658
        %v858 = vmul.f32 %v641, %v641
        %v859 = vmul.f32 %v660, %v660
        %v860 = vadd.f32 %v852, %v854
        %v861 = vadd.f32 %v860, %v856
        %v862 = vadd.f32 %v861, %v858
        %v863 = vrot.slane %v862, 4
        %v864 = vadd.f32 %v862, %v863
        %v865 = vrot.slane %v864, 2
        %v866 = vadd.f32 %v864, %v865
        %v867 = vrot.slane %v866, 1
        %v868 = vadd.f32 %v866, %v867
        %v869 = vadd.f32 %v853, %v855
        %v870 = vadd.f32 %v869, %v857
        %v871 = vadd.f32 %v870, %v859
        %v872 = vrot.slane %v871, 4
        %v873 = vadd.f32 %v871, %v872
        %v874 = vrot.slane %v873, 2
        %v875 = vadd.f32 %v873, %v874
        %v876 = vrot.slane %v875, 1
        %v877 = vadd.f32 %v875, %v876
        %v878 = vadd.f32 %v868, 1e-12
        %v879 = vadd.f32 %v877, 1e-12
        %v880 = vrsqrt.pop %v878
        %v881 = vmul.f32 %v880, %v878
        %v882 = vmul.f32 %v881, %v880
        %v883 = vmul.f32 0.5, %v882
        %v884 = vsub.f32 1.5, %v883
        %v885 = vmul.f32 %v880, %v884
        %vm886 = vweird.f32 %v878
        %vm887 = vweird.f32 %v880
        %vm888 = vmor %vm886, %vm887
        %v889 = vsel %vm888, %v880, %v885
        %v890 = vrsqrt.pop %v879
        %v891 = vmul.f32 %v890, %v879
        %v892 = vmul.f32 %v891, %v890
        %v893 = vmul.f32 0.5, %v892
        %v894 = vsub.f32 1.5, %v893
        %v895 = vmul.f32 %v890, %v894
        %vm896 = vweird.f32 %v879
        %vm897 = vweird.f32 %v890
        %vm898 = vmor %vm896, %vm897
        %v899 = vsel %vm898, %v890, %v895
        %v900 = vmul.f32 %v634, %v889
        %v901 = vmul.f32 %v653, %v899
        %v902 = vmul.f32 %v636, %v889
        %v903 = vmul.f32 %v655, %v899
        %v904 = vmul.f32 %v639, %v889
        %v905 = vmul.f32 %v658, %v899
        %v906 = vmul.f32 %v641, %v889
        %v907 = vmul.f32 %v660, %v899
        %v908 = vld [vmem:[%s9] sm:$0xf]
        %v909 = vld [vmem:[%s9 + $0x4] sm:$0x1]
        %v910 = vpack.c.bf16 %v902, %v900
        %v911 = vpack.c.bf16 %v903, %v901
        %v912 = vpack.c.bf16 %v906, %v904
        %v913 = vpack.c.bf16 %v907, %v905
        %v916 = vunpack.c.l.b16 %v908
        %v917 = vunpack.c.l.b16 %v909
        %v918 = vpack.c.b16 %v917, %v916
        %v920 = vsel %vm617, %v918, 0
        %922 = vmatpush.bf16.msra.mxu0 0
        %923 = vmatpush.bf16.msra.mxu0 0
        %924 = vmatpush.bf16.msra.mxu0 0
        %925 = vmatpush.bf16.msra.mxu0 0
        %926 = vmatpush.bf16.msra.mxu0 0
        %927 = vmatpush.bf16.msra.mxu0 0
        %928 = vmatpush.bf16.msra.mxu0 %v912
        %929 = vmatpush.bf16.msra.mxu0 %v910
        %930 = vmatmul.bf16.gmra.mxu0 %v920
        %v931 = vpop.f32.mrf.mxu0
        %v932 = vadd.f32 0.0, %v931
        %v933 = vpop.f32.mrf.mxu0
        %v934 = vadd.f32 0.0, %v933
        %935 = vdwg.mxu0
        %936 = vmatpush.bf16.msra.mxu0 0
        %937 = vmatpush.bf16.msra.mxu0 0
        %938 = vmatpush.bf16.msra.mxu0 0
        %939 = vmatpush.bf16.msra.mxu0 0
        %940 = vmatpush.bf16.msra.mxu0 0
        %941 = vmatpush.bf16.msra.mxu0 0
        %942 = vmatpush.bf16.msra.mxu0 %v913
        %943 = vmatpush.bf16.msra.mxu0 %v911
        %944 = vmatmul.bf16.gmra.mxu0 %v920
        %v945 = vpop.f32.mrf.mxu0
        %v946 = vadd.f32 0.0, %v945
        %v947 = vpop.f32.mrf.mxu0
        %v948 = vadd.f32 0.0, %v947
        %949 = vdwg.mxu0
        %v950 = vadd.s32 %v725, 8
        %v951 = vsel %vm520, %v934, -inf
        %v952 = vmax.f32 %v932, %v951
        %v953 = vrot.slane %v952, 4
        %v954 = vmax.f32 %v952, %v953
        %v955 = vrot.slane %v954, 2
        %v956 = vmax.f32 %v954, %v955
        %v957 = vrot.slane %v956, 1
        %v958 = vmax.f32 %v956, %v957
        %v959 = vsel %vm520, %v948, -inf
        %v960 = vmax.f32 %v946, %v959
        %v961 = vrot.slane %v960, 4
        %v962 = vmax.f32 %v960, %v961
        %v963 = vrot.slane %v962, 2
        %v964 = vmax.f32 %v962, %v963
        %v965 = vrot.slane %v964, 1
        %v966 = vmax.f32 %v964, %v965
        %vm967 = vcmp.eq.f32.partialorder %v932, %v958
        %vm968 = vcmp.eq.f32.partialorder %v946, %v966
        %vm969 = vcmp.eq.f32.partialorder %v934, %v958
        %vm970 = vcmp.eq.f32.partialorder %v948, %v966
        %v971 = vsel %vm967, %v725, 10
        %v972 = vsel %vm968, %v725, 10
        %v973 = vsel %vm969, %v950, 10
        %v974 = vsel %vm970, %v950, 10
        %v975 = vsel %vm520, %v973, 2147483647
        %vm976 = vcmp.lt.s32.totalorder %v971, %v975
        %v977 = vsel %vm976, %v971, %v975
        %v978 = vrot.slane %v977, 4
        %vm979 = vcmp.lt.s32.totalorder %v977, %v978
        %v980 = vsel %vm979, %v977, %v978
        %v981 = vrot.slane %v980, 2
        %vm982 = vcmp.lt.s32.totalorder %v980, %v981
        %v983 = vsel %vm982, %v980, %v981
        %v984 = vrot.slane %v983, 1
        %vm985 = vcmp.lt.s32.totalorder %v983, %v984
        %v986 = vsel %vm985, %v983, %v984
        %v987 = vsel %vm520, %v974, 2147483647
        %vm988 = vcmp.lt.s32.totalorder %v972, %v987
        %v989 = vsel %vm988, %v972, %v987
        %v990 = vrot.slane %v989, 4
        %vm991 = vcmp.lt.s32.totalorder %v989, %v990
        %v992 = vsel %vm991, %v989, %v990
        %v993 = vrot.slane %v992, 2
        %vm994 = vcmp.lt.s32.totalorder %v992, %v993
        %v995 = vsel %vm994, %v992, %v993
        %v996 = vrot.slane %v995, 1
        %vm997 = vcmp.lt.s32.totalorder %v995, %v996
        %v998 = vsel %vm997, %v995, %v996
        %v999 = vrot.slane %v998, 7
        %v1000 = vsel %vm519, %v986, %v999
        %1001 = vst.msk [vmem:[%s458] sm:$0x3] %vm765, %v1000
        %v1002 = vmul.f32 %v958, %v682
        %v1003 = vmul.f32 %v966, %v683
        %v1004 = vsel %vm519, %v1002, 0.0
        %v1005 = vsel %vm519, %v1003, 0.0
        %v1006 = vadd.f32 %v1004, %v1005
        %1007 = vadd.xlane.f32.xlu0 %v1006
        %v1008 = vpop.xlane.xlu0 %1007
        %v1009 = vrot.slane %v1008, 4
        %v1010 = vadd.f32 %v1008, %v1009
        %v1011 = vrot.slane %v1010, 2
        %v1012 = vadd.f32 %v1010, %v1011
        %v1013 = vrot.slane %v1012, 1
        %v1014 = vadd.f32 %v1012, %v1013
        %s1015 = vtos %v1014
        %vm1016 = vcmp.eq.s32.totalorder %v671, 0
        %vm1017 = vcmp.eq.s32.totalorder %v671, 1
        %vm1018 = vcmp.eq.s32.totalorder %v671, 2
        %v1019 = vstv %s1015
        %v1020 = vsel %vm1018, %v1019, 0.0
        %v1021 = vstv %s851
        %v1022 = vsel %vm1017, %v1021, %v1020
        %v1023 = vstv %s839
        %v1024 = vsel %vm1016, %v1023, %v1022
        %1025 = vst [vmem:[%s462] sm:$0x1] %v1024
        %s1026 = sand.u32 %s233, 1
        %s1027 = sand.u32 %s233, 1
        %s1028 = smul.addr %s1027, 64
        %s1029 = scalar_lea.vmem [#allocation4], %s1028
        %s1030 = smul.u32 2, %s26
        %p1031 = scmp.lt.s32.totalorder %s1030, 3
        %s1032 = scalar_select %p1031, %s1030, 3
        %s1033 = scalar_lea.vmem %s11, %s1032
        %s1034 = smul.u32 2, %s26
        %p1035 = scmp.lt.s32.totalorder %s1034, 3
        %s1036 = scalar_select %p1035, %s1034, 3
        %s1037 = scalar_lea.vmem %s12, %s1036
        %p1038 = scmp.lt.s32.totalorder %s26, 1
        %s1039 = scalar_select %p1038, %s26, 1
        %s1040 = scalar_lea.vmem %s13, %s1039
        // Predicated region
        $region57: #{stego_wrapper_forward.1} parent=55 // pred_check
          %p1041 = pneg %p243
        $region58: #{stego_wrapper_forward.1} parent=55 // pred_check_branch
          %1043 = sbr.rel (%p1041) target = $region60
        $region59: #{stego_wrapper_forward.1} parent=55 // pred_region
          %s1044 = smul.u32 2, %s26
          %s1045 = smul.addr %s1044, 8
          %s1046 = scalar_lea.vmem %s10, %s1045
          // Predicated region
          $region61: #{stego_wrapper_forward.1} parent=59 // pred_check
            _
          $region62: #{stego_wrapper_forward.1} parent=59 // pred_check_branch
            %1048 = sbr.rel (0) target = $region64
          $region63: #{stego_wrapper_forward.1} parent=59 // pred_region
            // Predicated region
            $region65: #{stego_wrapper_forward.1} parent=63 // pred_check
              _
            $region66: #{stego_wrapper_forward.1} parent=63 // pred_check_branch
              %1050 = sbr.rel (0) target = $region68
            $region67: #{stego_wrapper_forward.1} parent=63 // pred_region
              loop: start=0, step=1, limit=1
              $region69: #{stego_wrapper_forward.1} parent=67 // loop_pre_header
                _
              $region70: #{stego_wrapper_forward.1} parent=67 // loop_header
                %s1052 = sphi 0, %s1056
                %p1053 = scmp.ge.s32.totalorder %s1052, 1
                %s1057 = sphi %s1029, %s1029
                %s1058 = sphi %s1046, %s1046
              $region71: #{stego_wrapper_forward.1} parent=67 // loop_header_branch
                %1055 = sbr.rel (%p1053) target = $region75
              $region72: #{stego_wrapper_forward.1} parent=67 // loop_body
                %v1059 = vld [vmem:[%s1057] sm:$0xff]
                %1060 = vst [vmem:[%s1058] sm:$0xff] %v1059
                %v1061 = vld [vmem:[%s1057 + $0x8] sm:$0xff]
                %1062 = vst [vmem:[%s1058 + $0x8] sm:$0xff] %v1061
                %v1063 = vld [vmem:[%s1057 + $0x10] sm:$0xff]
                %1064 = vst [vmem:[%s1058 + $0x20] sm:$0xff] %v1063
                %v1065 = vld [vmem:[%s1057 + $0x18] sm:$0xff]
                %1066 = vst [vmem:[%s1058 + $0x28] sm:$0xff] %v1065
                %v1067 = vld [vmem:[%s1057 + $0x20] sm:$0xff]
                %1068 = vst [vmem:[%s1058 + $0x40] sm:$0xff] %v1067
                %v1069 = vld [vmem:[%s1057 + $0x28] sm:$0xff]
                %1070 = vst [vmem:[%s1058 + $0x48] sm:$0xff] %v1069
                %v1071 = vld [vmem:[%s1057 + $0x30] sm:$0xff]
                %1072 = vst [vmem:[%s1058 + $0x60] sm:$0xff] %v1071
                %v1073 = vld [vmem:[%s1057 + $0x38] sm:$0xff]
                %1074 = vst [vmem:[%s1058 + $0x68] sm:$0xff] %v1073
              $region73: #{stego_wrapper_forward.1} parent=67 // loop_footer
                %s1056 = sadd.s32 1, %s1052
              $region74: #{stego_wrapper_forward.1} parent=67 // loop_footer_branch
                %1051 = sbr.rel target = $region70
              $region75: #{stego_wrapper_forward.1} parent=67 // loop_exit
                _
            $region68: #{stego_wrapper_forward.1} parent=63 // pred_fallthru
              _
            // Predicated region
            $region76: #{stego_wrapper_forward.1} parent=63 // pred_check
              _
            $region77: #{stego_wrapper_forward.1} parent=63 // pred_check_branch
              %1076 = sbr.rel target = $region79
            $region78: #{stego_wrapper_forward.1} parent=63 // pred_region
              _
            $region79: #{stego_wrapper_forward.1} parent=63 // pred_fallthru
              _
          $region64: #{stego_wrapper_forward.1} parent=59 // pred_fallthru
            _
          %1077 = vnop
        $region60: #{stego_wrapper_forward.1} parent=55 // pred_fallthru
          _
        // Predicated region
        $region80: #{stego_wrapper_forward.1} parent=55 // pred_check
          %p1078 = pneg %p269
        $region81: #{stego_wrapper_forward.1} parent=55 // pred_check_branch
          %1080 = sbr.rel (%p1078) target = $region83
        $region82: #{stego_wrapper_forward.1} parent=55 // pred_region
          %s1081 = smul.u32 2, %s26
        $region83: #{stego_wrapper_forward.1} parent=55 // pred_fallthru
          _
        // Predicated region
        $region84: #{stego_wrapper_forward.1} parent=55 // pred_check
          %p1082 = pneg %p295
        $region85: #{stego_wrapper_forward.1} parent=55 // pred_check_branch
          %1084 = sbr.rel (%p1082) target = $region87
        $region86: #{stego_wrapper_forward.1} parent=55 // pred_region
          %s1085 = smul.u32 2, %s26
        $region87: #{stego_wrapper_forward.1} parent=55 // pred_fallthru
          _
        // Predicated region
        $region88: #{stego_wrapper_forward.1} parent=55 // pred_check
          %p1086 = pneg %p321
        $region89: #{stego_wrapper_forward.1} parent=55 // pred_check_branch
          %1088 = sbr.rel (%p1086) target = $region91
        $region90: #{stego_wrapper_forward.1} parent=55 // pred_region
          _
        $region91: #{stego_wrapper_forward.1} parent=55 // pred_fallthru
          _
      $region56: #{stego_wrapper_forward.1} parent=5 // pred_fallthru
        _
      %p1089 = scmp.le.s32.totalorder 2, %s21
      // Predicated region
      $region92: #{stego_wrapper_forward.1} parent=5 // pred_check
        %p1090 = pneg %p1089
      $region93: #{stego_wrapper_forward.1} parent=5 // pred_check_branch
        %1092 = sbr.rel (%p1090) target = $region95
      $region94: #{stego_wrapper_forward.1} parent=5 // pred_region
        %s1093 = ssub.s32 %s21, 2
        // Predicated region
        $region96: #{stego_wrapper_forward.1} parent=94 // pred_check
          %p1094 = pneg %p249
        $region97: #{stego_wrapper_forward.1} parent=94 // pred_check_branch
          %1096 = sbr.rel (%p1094) target = $region99
        $region98: #{stego_wrapper_forward.1} parent=94 // pred_region
          %s1097 = sand.u32 %s234, 1
          %s1098 = sand.u32 %s234, 1
          %s1099 = smul.addr %s1098, 64
          %s1100 = scalar_lea.vmem [#allocation4], %s1099
        $region99: #{stego_wrapper_forward.1} parent=94 // pred_fallthru
          _
        // Predicated region
        $region100: #{stego_wrapper_forward.1} parent=94 // pred_check
          %p1101 = pneg %p275
        $region101: #{stego_wrapper_forward.1} parent=94 // pred_check_branch
          %1103 = sbr.rel (%p1101) target = $region103
        $region102: #{stego_wrapper_forward.1} parent=94 // pred_region
          %s1104 = smul.u32 2, %s27
          %p1105 = scmp.lt.s32.totalorder %s1104, 3
          %s1106 = scalar_select %p1105, %s1104, 3
          %s1107 = scalar_lea.vmem %s11, %s1106
        $region103: #{stego_wrapper_forward.1} parent=94 // pred_fallthru
          _
        // Predicated region
        $region104: #{stego_wrapper_forward.1} parent=94 // pred_check
          %p1108 = pneg %p301
        $region105: #{stego_wrapper_forward.1} parent=94 // pred_check_branch
          %1110 = sbr.rel (%p1108) target = $region107
        $region106: #{stego_wrapper_forward.1} parent=94 // pred_region
          %s1111 = smul.u32 2, %s27
          %p1112 = scmp.lt.s32.totalorder %s1111, 3
          %s1113 = scalar_select %p1112, %s1111, 3
          %s1114 = scalar_lea.vmem %s12, %s1113
        $region107: #{stego_wrapper_forward.1} parent=94 // pred_fallthru
          _
        // Predicated region
        $region108: #{stego_wrapper_forward.1} parent=94 // pred_check
          %p1115 = pneg %p327
        $region109: #{stego_wrapper_forward.1} parent=94 // pred_check_branch
          %1117 = sbr.rel (%p1115) target = $region111
        $region110: #{stego_wrapper_forward.1} parent=94 // pred_region
          %p1118 = scmp.lt.s32.totalorder %s27, 1
          %s1119 = scalar_select %p1118, %s27, 1
          %s1120 = scalar_lea.vmem %s13, %s1119
        $region111: #{stego_wrapper_forward.1} parent=94 // pred_fallthru
          _
      $region95: #{stego_wrapper_forward.1} parent=5 // pred_fallthru
        _
    $region6: #{stego_wrapper_forward.1} parent=1 // loop_footer
      %s25 = sadd.s32 1, %s21
    $region7: #{stego_wrapper_forward.1} parent=1 // loop_footer_branch
      %20 = sbr.rel target = $region3
    $region8: #{stego_wrapper_forward.1} parent=1 // loop_exit
      _

</llo_original>
